<compile_context>
chip_gen: v7x
topology: tpu7x:2x2x1
jax: 0.10.0
libtpu: 0.0.40
codegen_flags: <defaults>
</compile_context>

<pallas_src>
import functools
import math

import jax
import jax.numpy as jnp
from jax.experimental import pallas as pl
from jax.experimental.pallas import tpu as pltpu


# ------------------------------ Pallas kernel ---------------------------------
def _feature_sampler_kernel(rp_ref, homo_ref, *refs, feat_hw, bev_scale, bev_offset):
    """One grid step == one camera view.

    rp_ref   : (1, 3, HW) VMEM   reference-point logits (broadcast over views)
    homo_ref : (V, L*16)  SMEM   per-(view, level) image-scaled homographies
    refs     : L feature refs (1, C, Hf*Wf) VMEM, then outputs
               bev_ref  (1, L, C, HW)
               mask_ref (1, L, HW)
    """
    num_levels = len(feat_hw)
    feat_refs = refs[:num_levels]
    bev_ref, mask_ref = refs[num_levels], refs[num_levels + 1]

    v = pl.program_id(0)
    hw = rp_ref.shape[-1]

    # _gen_3d_points: sigmoid + BEV affine (channels on sublanes, HW on lanes)
    sig = jax.nn.sigmoid(rp_ref[0])                        # (3, HW)
    wx = sig[0:1] * bev_scale[0] + bev_offset[0]           # (1, HW)
    wy = sig[1:2] * bev_scale[1] + bev_offset[1]
    wz = sig[2:3] * bev_scale[2] + bev_offset[2]

    mask_rows = []
    for l in range(num_levels):
        hf, wf = feat_hw[l]
        base_off = l * 16

        def m(i, j, _b=base_off):
            return homo_ref[v, _b + i * 4 + j]             # SMEM scalar read

        # rows 0..2 of (view_scale @ ego2img) applied to [wx, wy, wz, 1]^T,
        # as scalar*vector FMAs on the VPU (avoids a K=3/4 MXU contraction).
        px = m(0, 0) * wx + m(0, 1) * wy + m(0, 2) * wz + m(0, 3)
        py = m(1, 0) * wx + m(1, 1) * wy + m(1, 2) * wz + m(1, 3)
        pz = m(2, 0) * wx + m(2, 1) * wy + m(2, 2) * wz + m(2, 3)

        z = jnp.maximum(pz, 0.05)

        # in-bounds mask in exact multiply form (z > 0), no division involved
        in_b = (px >= 0.0) & (px < float(wf) * z) & \
               (py >= 0.0) & (py < float(hf) * z)
        mask_rows.append(in_b.astype(jnp.float32))         # (1, HW)

        # perspective divide: EUP approx reciprocal + one NR step (≈ f32-exact,
        # 3 extra VPU ops on a (1, HW) vector; divide sequence eliminated)
        inv_z = pl.reciprocal(z, approx=True)
        inv_z = inv_z * (2.0 - z * inv_z)
        x = px * inv_z
        y = py * inv_z

        x0 = jnp.floor(x)
        y0 = jnp.floor(y)
        tx = x - x0
        ty = y - y0
        x0i = x0.astype(jnp.int32)
        y0i = y0.astype(jnp.int32)

        # Per-corner validity folded into the (1, HW) weights.  This both
        # implements zeros padding and kills the flattened-index row-wrap case
        # (x0i + 1 == wf would otherwise alias diff == 1 on the next row).
        vx0 = ((x0i >= 0) & (x0i < wf)).astype(jnp.float32)
        vx1 = ((x0i >= -1) & (x0i < wf - 1)).astype(jnp.float32)
        vy0 = ((y0i >= 0) & (y0i < hf)).astype(jnp.float32)
        vy1 = ((y0i >= -1) & (y0i < hf - 1)).astype(jnp.float32)

        w00 = (1.0 - tx) * (1.0 - ty) * (vx0 * vy0)
        w01 = tx * (1.0 - ty) * (vx1 * vy0)
        w10 = (1.0 - tx) * ty * (vx0 * vy1)
        w11 = tx * ty * (vx1 * vy1)

        # Sampling matrix via a single diff-based nested select:
        # 1 big subtract + 4 compares + 4 selects on the (Hf*Wf, HW) tile,
        # one live f32 temporary (was 4 one-hot builds + 3 adds).
        pix = jax.lax.broadcasted_iota(jnp.int32, (hf * wf, hw), 0)
        diff = pix - (y0i * wf + x0i)                      # (Hf*Wf, HW)
        samp = jnp.where(
            diff == 0, w00,
            jnp.where(diff == 1, w01,
                      jnp.where(diff == wf, w10,
                                jnp.where(diff == wf + 1, w11, 0.0))))

        # bf16 MXU pass (single-pass vs multi-pass f32 emulation), f32 accum.
        # samp is built in f32 and cast exactly once (v5e has no bf16 VPU).
        feat_bf = feat_refs[l][0].astype(jnp.bfloat16)     # (C, Hf*Wf)
        bev_ref[0, l] = jnp.dot(feat_bf, samp.astype(jnp.bfloat16),
                                preferred_element_type=jnp.float32)  # (C, HW)

    # single dense (L, HW) mask store per view instead of L partial stores
    mask_ref[0] = jnp.concatenate(mask_rows, axis=0)


# --------------------------------- wrapper -------------------------------------
def _scaled_homography(ego2img, feat_hw, orig_img_hw):
    """view_scale @ ego2img (mirrors FeatureSampler._get_homography, in f32)."""
    sy = feat_hw[0] / orig_img_hw[0]
    sx = feat_hw[1] / orig_img_hw[1]
    view = jnp.diag(jnp.array([sx, sy, 1.0, 1.0], jnp.float32))
    return jnp.einsum("ij,njk->nik", view, ego2img)        # (N, 4, 4)


def feature_sampler(feats, reference_points, bev_range, ego2img, orig_img_hw,
                    num_views):
    """Pallas forward of FeatureSampler (compile_model=False path).

    feats            : list of L arrays (N, C, Hf_l, Wf_l), N = bs * num_views
    reference_points : (bs, 3, H, W) BEV reference-point logits
    bev_range        : 6 floats (static metadata)
    ego2img          : (N, 4, 4) homographies (meta['ego2img'])
    orig_img_hw      : (H_img, W_img) of meta['img'] (static metadata)
    Returns (bev_feats (N, L*C, H, W), masks (bs, num_views*L, H, W)).
    """
    num_levels = len(feats)
    n, c = feats[0].shape[0], feats[0].shape[1]
    bs = n // num_views
    # TODO(synk): torch forward only defines a consistent batch ordering for bs==1.
    assert bs == 1 and reference_points.shape[0] == 1
    assert all(f.shape[1] == c for f in feats), "per-level channels must match"
    h, w = reference_points.shape[2], reference_points.shape[3]
    hw = h * w
    feat_hw = tuple((int(f.shape[2]), int(f.shape[3])) for f in feats)

    # metadata prep (the module's no_grad() homography math) -> SMEM scalar table
    homos = jnp.stack(
        [_scaled_homography(ego2img, fhw, orig_img_hw) for fhw in feat_hw], axis=1)
    homos_flat = homos.reshape(n, num_levels * 16)          # (V, L*16)

    bev_scale = tuple(float(bev_range[i + 3] - bev_range[i]) for i in range(3))
    bev_offset = tuple(float(bev_range[i]) for i in range(3))

    # free (no-transpose) reshapes into the kernel layout: channels on sublanes,
    # flattened spatial (HW / Hf*Wf) on lanes.
    rp = reference_points.reshape(1, 3, hw)
    feats_flat = [f.reshape(n, c, -1) for f in feats]

    kernel = functools.partial(_feature_sampler_kernel, feat_hw=feat_hw,
                               bev_scale=bev_scale, bev_offset=bev_offset)

    feat_specs = [pl.BlockSpec((1, c, fh * fw), lambda v: (v, 0, 0))
                  for (fh, fw) in feat_hw]

    # TODO(synk): at production sizes add an HW-tile "parallel" grid axis
    # (balances the two v7x TensorCores), use the DMA-gather sampling path,
    # and set vmem_limit_bytes / pipeline_mode=pl.Buffered per chip.
    bev, masks = pl.pallas_call(
        kernel,
        out_shape=(
            jax.ShapeDtypeStruct((n, num_levels, c, hw), jnp.float32),
            jax.ShapeDtypeStruct((n, num_levels, hw), jnp.float32),
        ),
        grid=(n,),
        in_specs=[
            pl.BlockSpec((1, 3, hw), lambda v: (0, 0, 0)),        # broadcast over views
            pl.BlockSpec(memory_space=pltpu.MemorySpace.SMEM),    # homography scalars
            *feat_specs,
        ],
        out_specs=(
            pl.BlockSpec((1, num_levels, c, hw), lambda v: (v, 0, 0, 0)),
            pl.BlockSpec((1, num_levels, hw), lambda v: (v, 0, 0)),
        ),
        compiler_params=pltpu.CompilerParams(dimension_semantics=("parallel",)),
    )(rp, homos_flat, *feats_flat)

    # free reshapes back to the module's NCHW outputs
    bev_feats = bev.reshape(n, num_levels * c, h, w)        # == cat over levels, dim=1
    masks = masks.reshape(bs, num_views * num_levels, h, w)  # masks_quant is identity
    return bev_feats, masks


# --------------------- plain-JAX reference (for checking) ----------------------
def _bilinear_sample_nchw(feat, coords):
    """Absolute-pixel bilinear sampling with zeros padding. feat (N,C,Hf,Wf)."""
    n, c, hf, wf = feat.shape
    x = coords[..., 0]
    y = coords[..., 1]
    hout, wout = x.shape[1], x.shape[2]
    x0 = jnp.floor(x)
    y0 = jnp.floor(y)
    tx = x - x0
    ty = y - y0
    x0 = x0.astype(jnp.int32)
    y0 = y0.astype(jnp.int32)
    flat = feat.reshape(n, c, hf * wf)

    def corner(xi, yi, wgt):
        valid = (xi >= 0) & (xi < wf) & (yi >= 0) & (yi < hf)
        idx = jnp.where(valid, yi * wf + xi, 0).reshape(n, 1, hout * wout)
        idx = jnp.broadcast_to(idx, (n, c, hout * wout))
        g = jnp.take_along_axis(flat, idx, axis=2).reshape(n, c, hout, wout)
        return g * (valid.astype(feat.dtype) * wgt)[:, None]

    return (corner(x0, y0, (1.0 - tx) * (1.0 - ty))
            + corner(x0 + 1, y0, tx * (1.0 - ty))
            + corner(x0, y0 + 1, (1.0 - tx) * ty)
            + corner(x0 + 1, y0 + 1, tx * ty))


def reference_forward(feats, reference_points, bev_range, ego2img, orig_img_hw,
                      num_views):
    n = feats[0].shape[0]
    bs = n // num_views
    h, w = reference_points.shape[2], reference_points.shape[3]

    # _gen_3d_points
    rp3 = jax.nn.sigmoid(reference_points).transpose(0, 2, 3, 1)        # (bs,H,W,3)
    scale = jnp.array([bev_range[3] - bev_range[0],
                       bev_range[4] - bev_range[1],
                       bev_range[5] - bev_range[2]], jnp.float32)
    offset = jnp.array(bev_range[:3], jnp.float32)
    rp3 = rp3 * scale + offset
    rp4 = jnp.concatenate(
        [rp3, jnp.ones(rp3.shape[:-1] + (1,), jnp.float32)], axis=-1)   # (bs,H,W,4)

    bev_feats, masks = [], []
    for feat in feats:
        hf, wf = feat.shape[2], feat.shape[3]
        homo = _scaled_homography(ego2img, (hf, wf), orig_img_hw)       # (N,4,4)
        # per-view projection (torch loops over homographies + concat dim 0)
        nc = (homo[:, None, None, None, :, :] *
              rp4[None, :, :, :, None, :]).sum(-1)                      # (N,bs,H,W,4)
        nc = nc.reshape(n * bs, h, w, 4)
        z = jnp.maximum(nc[..., 2], 0.05)
        x = nc[..., 0] / z
        y = nc[..., 1] / z
        mask = (x >= 0) & (x < wf) & (y >= 0) & (y < hf)
        coords = jnp.stack([x, y], axis=-1)
        bev_feats.append(_bilinear_sample_nchw(feat, coords))
        masks.append(mask)

    bev = jnp.concatenate(bev_feats, axis=1)                            # (N, L*C, H, W)
    masks = jnp.stack(masks, axis=1).astype(jnp.float32).reshape(bs, -1, h, w)
    return bev, masks


# ------------------------------------ main --------------------------------------
if __name__ == "__main__":
    key = jax.random.PRNGKey(0)
    k_f0, k_f1, k_rp, k_h = jax.random.split(key, 4)

    num_views = 3
    c = 32
    h_bev, w_bev = 8, 16                    # HW = 128 -> lane-dense blocks everywhere
    feat_hw = [(16, 32), (8, 16)]           # two FPN levels
    orig_img_hw = (64.0, 128.0)             # original image (H, W) from meta['img']
    bev_range = (-2.0, -2.0, 0.5, 2.0, 2.0, 4.0)

    feats = [
        jax.random.normal(k_f0, (num_views, c, feat_hw[0][0], feat_hw[0][1]),
                          jnp.float32),
        jax.random.normal(k_f1, (num_views, c, feat_hw[1][0], feat_hw[1][1]),
                          jnp.float32),
    ]
    reference_points = jax.random.normal(k_rp, (1, 3, h_bev, w_bev), jnp.float32)

    # synthetic ego->image homographies: pinhole intrinsics + per-view yaw + noise
    focal = 24.0
    intr = jnp.array([[focal, 0.0, 64.0, 0.0],
                      [0.0, focal, 32.0, 0.0],
                      [0.0, 0.0, 1.0, 0.0],
                      [0.0, 0.0, 0.0, 1.0]], jnp.float32)
    homos = []
    for v in range(num_views):
        th = 0.3 * (v - 1)
        rz = jnp.array([[math.cos(th), -math.sin(th), 0.0, 0.0],
                        [math.sin(th), math.cos(th), 0.0, 0.0],
                        [0.0, 0.0, 1.0, 0.0],
                        [0.0, 0.0, 0.0, 1.0]], jnp.float32)
        homos.append(intr @ rz)
    ego2img = jnp.stack(homos) + 0.01 * jax.random.normal(
        k_h, (num_views, 4, 4), jnp.float32)

    bev_feats, masks = feature_sampler(feats, reference_points, bev_range,
                                       ego2img, orig_img_hw, num_views)
    bev_feats = jax.block_until_ready(bev_feats)
    masks = jax.block_until_ready(masks)

    ref_bev, ref_masks = reference_forward(feats, reference_points, bev_range,
                                           ego2img, orig_img_hw, num_views)
    assert bev_feats.shape == ref_bev.shape, (bev_feats.shape, ref_bev.shape)
    assert masks.shape == ref_masks.shape, (masks.shape, ref_masks.shape)

    # Tolerance documents the bf16 MXU sampling matmul + approx-reciprocal(+NR)
    # perspective divide; typical observed error is well below 1e-2.
    bev_ok = bool(jnp.allclose(bev_feats, ref_bev, atol=3e-2, rtol=3e-2))
    mask_ok = bool(jnp.allclose(masks, ref_masks))
    if not (bev_ok and mask_ok):
        raise AssertionError(
            "kernel/reference mismatch: "
            f"bev max diff {float(jnp.max(jnp.abs(bev_feats - ref_bev)))}, "
            f"mask max diff {float(jnp.max(jnp.abs(masks - ref_masks)))}")
    print("KERNEL_OK")
</pallas_src>

<mosaic_0001>
module attributes {stable_mosaic.version = 11 : i64} {
  func.func @_feature_sampler_kernel(%arg0: i32, %arg1: memref<1x3x128xf32, #tpu.memory_space<vmem>>, %arg2: memref<3x32xf32, #tpu.memory_space<smem>>, %arg3: memref<1x32x512xf32, #tpu.memory_space<vmem>>, %arg4: memref<1x32x128xf32, #tpu.memory_space<vmem>>, %arg5: memref<1x2x32x128xf32, #tpu.memory_space<vmem>>, %arg6: memref<1x2x128xf32, #tpu.memory_space<vmem>>) attributes {dimension_semantics = [#tpu.dimension_semantics<parallel>], iteration_bounds = array<i64: 3>, scalar_prefetch = 0 : i64, scratch_operands = 0 : i64, tpu.core_type = #tpu.core_type<tc>, window_params = [{pipeline_mode = #tpu.pipeline_mode<synchronous>, transform_indices = @transform_0, window_bounds = array<i64: 1, 3, 128>}, {transform_indices = @transform_1, window_bounds = array<i64: 3, 32>}, {transform_indices = @transform_2, window_bounds = array<i64: 1, 32, 512>}, {transform_indices = @transform_3, window_bounds = array<i64: 1, 32, 128>}, {transform_indices = @transform_4, window_bounds = array<i64: 1, 2, 32, 128>}, {transform_indices = @transform_5, window_bounds = array<i64: 1, 2, 128>}]} {
    %c0 = arith.constant 0 : index
    %c0_0 = arith.constant 0 : index
    %c0_1 = arith.constant 0 : index
    %0 = vector.load %arg1[%c0, %c0_0, %c0_1] : memref<1x3x128xf32, #tpu.memory_space<vmem>>, vector<1x3x128xf32>
    %1 = vector.shape_cast %0 : vector<1x3x128xf32> to vector<3x128xf32>
    %2 = arith.negf %1 : vector<3x128xf32>
    %3 = math.exp %2 : vector<3x128xf32>
    %cst = arith.constant 1.000000e+00 : f32
    %4 = vector.broadcast %cst : f32 to vector<3x128xf32>
    %5 = arith.addf %4, %3 : vector<3x128xf32>
    %6 = arith.divf %4, %5 : vector<3x128xf32>
    %7 = vector.extract_strided_slice %6 {offsets = [0, 0], sizes = [1, 128], strides = [1, 1]} : vector<3x128xf32> to vector<1x128xf32>
    %cst_2 = arith.constant 4.000000e+00 : f32
    %8 = vector.broadcast %cst_2 : f32 to vector<1x128xf32>
    %9 = arith.mulf %7, %8 : vector<1x128xf32>
    %cst_3 = arith.constant -2.000000e+00 : f32
    %10 = vector.broadcast %cst_3 : f32 to vector<1x128xf32>
    %11 = arith.addf %9, %10 : vector<1x128xf32>
    %12 = vector.extract_strided_slice %6 {offsets = [1, 0], sizes = [1, 128], strides = [1, 1]} : vector<3x128xf32> to vector<1x128xf32>
    %cst_4 = arith.constant 4.000000e+00 : f32
    %13 = vector.broadcast %cst_4 : f32 to vector<1x128xf32>
    %14 = arith.mulf %12, %13 : vector<1x128xf32>
    %cst_5 = arith.constant -2.000000e+00 : f32
    %15 = vector.broadcast %cst_5 : f32 to vector<1x128xf32>
    %16 = arith.addf %14, %15 : vector<1x128xf32>
    %17 = vector.extract_strided_slice %6 {offsets = [2, 0], sizes = [1, 128], strides = [1, 1]} : vector<3x128xf32> to vector<1x128xf32>
    %cst_6 = arith.constant 3.500000e+00 : f32
    %18 = vector.broadcast %cst_6 : f32 to vector<1x128xf32>
    %19 = arith.mulf %17, %18 : vector<1x128xf32>
    %cst_7 = arith.constant 5.000000e-01 : f32
    %20 = vector.broadcast %cst_7 : f32 to vector<1x128xf32>
    %21 = arith.addf %19, %20 : vector<1x128xf32>
    %22 = arith.index_cast %arg0 : i32 to index
    %c0_8 = arith.constant 0 : index
    %23 = memref.load %arg2[%22, %c0_8] : memref<3x32xf32, #tpu.memory_space<smem>>
    %24 = vector.broadcast %23 : f32 to vector<1x128xf32>
    %25 = arith.mulf %24, %11 : vector<1x128xf32>
    %26 = arith.index_cast %arg0 : i32 to index
    %c1 = arith.constant 1 : index
    %27 = memref.load %arg2[%26, %c1] : memref<3x32xf32, #tpu.memory_space<smem>>
    %28 = vector.broadcast %27 : f32 to vector<1x128xf32>
    %29 = arith.mulf %28, %16 : vector<1x128xf32>
    %30 = arith.addf %25, %29 : vector<1x128xf32>
    %31 = arith.index_cast %arg0 : i32 to index
    %c2 = arith.constant 2 : index
    %32 = memref.load %arg2[%31, %c2] : memref<3x32xf32, #tpu.memory_space<smem>>
    %33 = vector.broadcast %32 : f32 to vector<1x128xf32>
    %34 = arith.mulf %33, %21 : vector<1x128xf32>
    %35 = arith.addf %30, %34 : vector<1x128xf32>
    %36 = arith.index_cast %arg0 : i32 to index
    %c3 = arith.constant 3 : index
    %37 = memref.load %arg2[%36, %c3] : memref<3x32xf32, #tpu.memory_space<smem>>
    %38 = vector.broadcast %37 : f32 to vector<1x128xf32>
    %39 = arith.addf %35, %38 : vector<1x128xf32>
    %40 = arith.index_cast %arg0 : i32 to index
    %c4 = arith.constant 4 : index
    %41 = memref.load %arg2[%40, %c4] : memref<3x32xf32, #tpu.memory_space<smem>>
    %42 = vector.broadcast %41 : f32 to vector<1x128xf32>
    %43 = arith.mulf %42, %11 : vector<1x128xf32>
    %44 = arith.index_cast %arg0 : i32 to index
    %c5 = arith.constant 5 : index
    %45 = memref.load %arg2[%44, %c5] : memref<3x32xf32, #tpu.memory_space<smem>>
    %46 = vector.broadcast %45 : f32 to vector<1x128xf32>
    %47 = arith.mulf %46, %16 : vector<1x128xf32>
    %48 = arith.addf %43, %47 : vector<1x128xf32>
    %49 = arith.index_cast %arg0 : i32 to index
    %c6 = arith.constant 6 : index
    %50 = memref.load %arg2[%49, %c6] : memref<3x32xf32, #tpu.memory_space<smem>>
    %51 = vector.broadcast %50 : f32 to vector<1x128xf32>
    %52 = arith.mulf %51, %21 : vector<1x128xf32>
    %53 = arith.addf %48, %52 : vector<1x128xf32>
    %54 = arith.index_cast %arg0 : i32 to index
    %c7 = arith.constant 7 : index
    %55 = memref.load %arg2[%54, %c7] : memref<3x32xf32, #tpu.memory_space<smem>>
    %56 = vector.broadcast %55 : f32 to vector<1x128xf32>
    %57 = arith.addf %53, %56 : vector<1x128xf32>
    %58 = arith.index_cast %arg0 : i32 to index
    %c8 = arith.constant 8 : index
    %59 = memref.load %arg2[%58, %c8] : memref<3x32xf32, #tpu.memory_space<smem>>
    %60 = vector.broadcast %59 : f32 to vector<1x128xf32>
    %61 = arith.mulf %60, %11 : vector<1x128xf32>
    %62 = arith.index_cast %arg0 : i32 to index
    %c9 = arith.constant 9 : index
    %63 = memref.load %arg2[%62, %c9] : memref<3x32xf32, #tpu.memory_space<smem>>
    %64 = vector.broadcast %63 : f32 to vector<1x128xf32>
    %65 = arith.mulf %64, %16 : vector<1x128xf32>
    %66 = arith.addf %61, %65 : vector<1x128xf32>
    %67 = arith.index_cast %arg0 : i32 to index
    %c10 = arith.constant 10 : index
    %68 = memref.load %arg2[%67, %c10] : memref<3x32xf32, #tpu.memory_space<smem>>
    %69 = vector.broadcast %68 : f32 to vector<1x128xf32>
    %70 = arith.mulf %69, %21 : vector<1x128xf32>
    %71 = arith.addf %66, %70 : vector<1x128xf32>
    %72 = arith.index_cast %arg0 : i32 to index
    %c11 = arith.constant 11 : index
    %73 = memref.load %arg2[%72, %c11] : memref<3x32xf32, #tpu.memory_space<smem>>
    %74 = vector.broadcast %73 : f32 to vector<1x128xf32>
    %75 = arith.addf %71, %74 : vector<1x128xf32>
    %cst_9 = arith.constant 5.000000e-02 : f32
    %76 = vector.broadcast %cst_9 : f32 to vector<1x128xf32>
    %77 = arith.maximumf %75, %76 : vector<1x128xf32>
    %cst_10 = arith.constant 0.000000e+00 : f32
    %78 = vector.broadcast %cst_10 : f32 to vector<1x128xf32>
    %79 = arith.cmpf oge, %39, %78 : vector<1x128xf32>
    %cst_11 = arith.constant 3.200000e+01 : f32
    %80 = vector.broadcast %cst_11 : f32 to vector<1x128xf32>
    %81 = arith.mulf %80, %77 : vector<1x128xf32>
    %82 = arith.cmpf olt, %39, %81 : vector<1x128xf32>
    %83 = arith.andi %79, %82 : vector<1x128xi1>
    %cst_12 = arith.constant 0.000000e+00 : f32
    %84 = vector.broadcast %cst_12 : f32 to vector<1x128xf32>
    %85 = arith.cmpf oge, %57, %84 : vector<1x128xf32>
    %86 = arith.andi %83, %85 : vector<1x128xi1>
    %cst_13 = arith.constant 1.600000e+01 : f32
    %87 = vector.broadcast %cst_13 : f32 to vector<1x128xf32>
    %88 = arith.mulf %87, %77 : vector<1x128xf32>
    %89 = arith.cmpf olt, %57, %88 : vector<1x128xf32>
    %90 = arith.andi %86, %89 : vector<1x128xi1>
    %91 = arith.extui %90 : vector<1x128xi1> to vector<1x128xi32>
    %92 = arith.sitofp %91 : vector<1x128xi32> to vector<1x128xf32>
    %93 = tpu.reciprocal %77 {approx = true} : vector<1x128xf32> -> vector<1x128xf32>
    %94 = arith.mulf %77, %93 : vector<1x128xf32>
    %cst_14 = arith.constant 2.000000e+00 : f32
    %95 = vector.broadcast %cst_14 : f32 to vector<1x128xf32>
    %96 = arith.subf %95, %94 : vector<1x128xf32>
    %97 = arith.mulf %93, %96 : vector<1x128xf32>
    %98 = arith.mulf %39, %97 : vector<1x128xf32>
    %99 = arith.mulf %57, %97 : vector<1x128xf32>
    %100 = math.floor %98 : vector<1x128xf32>
    %101 = math.floor %99 : vector<1x128xf32>
    %102 = arith.subf %98, %100 : vector<1x128xf32>
    %103 = arith.subf %99, %101 : vector<1x128xf32>
    %104 = arith.fptosi %100 : vector<1x128xf32> to vector<1x128xi32>
    %105 = arith.fptosi %101 : vector<1x128xf32> to vector<1x128xi32>
    %c0_i32 = arith.constant 0 : i32
    %106 = vector.broadcast %c0_i32 : i32 to vector<1x128xi32>
    %107 = arith.cmpi sge, %104, %106 : vector<1x128xi32>
    %c32_i32 = arith.constant 32 : i32
    %108 = vector.broadcast %c32_i32 : i32 to vector<1x128xi32>
    %109 = arith.cmpi slt, %104, %108 : vector<1x128xi32>
    %110 = arith.andi %107, %109 : vector<1x128xi1>
    %111 = arith.extui %110 : vector<1x128xi1> to vector<1x128xi32>
    %112 = arith.sitofp %111 : vector<1x128xi32> to vector<1x128xf32>
    %c-1_i32 = arith.constant -1 : i32
    %113 = vector.broadcast %c-1_i32 : i32 to vector<1x128xi32>
    %114 = arith.cmpi sge, %104, %113 : vector<1x128xi32>
    %c31_i32 = arith.constant 31 : i32
    %115 = vector.broadcast %c31_i32 : i32 to vector<1x128xi32>
    %116 = arith.cmpi slt, %104, %115 : vector<1x128xi32>
    %117 = arith.andi %114, %116 : vector<1x128xi1>
    %118 = arith.extui %117 : vector<1x128xi1> to vector<1x128xi32>
    %119 = arith.sitofp %118 : vector<1x128xi32> to vector<1x128xf32>
    %c0_i32_15 = arith.constant 0 : i32
    %120 = vector.broadcast %c0_i32_15 : i32 to vector<1x128xi32>
    %121 = arith.cmpi sge, %105, %120 : vector<1x128xi32>
    %c16_i32 = arith.constant 16 : i32
    %122 = vector.broadcast %c16_i32 : i32 to vector<1x128xi32>
    %123 = arith.cmpi slt, %105, %122 : vector<1x128xi32>
    %124 = arith.andi %121, %123 : vector<1x128xi1>
    %125 = arith.extui %124 : vector<1x128xi1> to vector<1x128xi32>
    %126 = arith.sitofp %125 : vector<1x128xi32> to vector<1x128xf32>
    %c-1_i32_16 = arith.constant -1 : i32
    %127 = vector.broadcast %c-1_i32_16 : i32 to vector<1x128xi32>
    %128 = arith.cmpi sge, %105, %127 : vector<1x128xi32>
    %c15_i32 = arith.constant 15 : i32
    %129 = vector.broadcast %c15_i32 : i32 to vector<1x128xi32>
    %130 = arith.cmpi slt, %105, %129 : vector<1x128xi32>
    %131 = arith.andi %128, %130 : vector<1x128xi1>
    %132 = arith.extui %131 : vector<1x128xi1> to vector<1x128xi32>
    %133 = arith.sitofp %132 : vector<1x128xi32> to vector<1x128xf32>
    %cst_17 = arith.constant 1.000000e+00 : f32
    %134 = vector.broadcast %cst_17 : f32 to vector<1x128xf32>
    %135 = arith.subf %134, %102 : vector<1x128xf32>
    %cst_18 = arith.constant 1.000000e+00 : f32
    %136 = vector.broadcast %cst_18 : f32 to vector<1x128xf32>
    %137 = arith.subf %136, %103 : vector<1x128xf32>
    %138 = arith.mulf %135, %137 : vector<1x128xf32>
    %139 = arith.mulf %112, %126 : vector<1x128xf32>
    %140 = arith.mulf %138, %139 : vector<1x128xf32>
    %cst_19 = arith.constant 1.000000e+00 : f32
    %141 = vector.broadcast %cst_19 : f32 to vector<1x128xf32>
    %142 = arith.subf %141, %103 : vector<1x128xf32>
    %143 = arith.mulf %102, %142 : vector<1x128xf32>
    %144 = arith.mulf %119, %126 : vector<1x128xf32>
    %145 = arith.mulf %143, %144 : vector<1x128xf32>
    %cst_20 = arith.constant 1.000000e+00 : f32
    %146 = vector.broadcast %cst_20 : f32 to vector<1x128xf32>
    %147 = arith.subf %146, %102 : vector<1x128xf32>
    %148 = arith.mulf %147, %103 : vector<1x128xf32>
    %149 = arith.mulf %112, %133 : vector<1x128xf32>
    %150 = arith.mulf %148, %149 : vector<1x128xf32>
    %151 = arith.mulf %102, %103 : vector<1x128xf32>
    %152 = arith.mulf %119, %133 : vector<1x128xf32>
    %153 = arith.mulf %151, %152 : vector<1x128xf32>
    %154 = tpu.iota {dimensions = array<i32: 0>} : vector<512x128xi32>
    %c32_i32_21 = arith.constant 32 : i32
    %155 = vector.broadcast %c32_i32_21 : i32 to vector<1x128xi32>
    %156 = arith.muli %105, %155 : vector<1x128xi32>
    %157 = arith.addi %156, %104 : vector<1x128xi32>
    %158 = vector.broadcast %157 : vector<1x128xi32> to vector<512x128xi32>
    %159 = arith.subi %154, %158 : vector<512x128xi32>
    %c0_i32_22 = arith.constant 0 : i32
    %160 = vector.broadcast %c0_i32_22 : i32 to vector<512x128xi32>
    %161 = arith.cmpi eq, %159, %160 : vector<512x128xi32>
    %c1_i32 = arith.constant 1 : i32
    %162 = vector.broadcast %c1_i32 : i32 to vector<512x128xi32>
    %163 = arith.cmpi eq, %159, %162 : vector<512x128xi32>
    %c32_i32_23 = arith.constant 32 : i32
    %164 = vector.broadcast %c32_i32_23 : i32 to vector<512x128xi32>
    %165 = arith.cmpi eq, %159, %164 : vector<512x128xi32>
    %c33_i32 = arith.constant 33 : i32
    %166 = vector.broadcast %c33_i32 : i32 to vector<512x128xi32>
    %167 = arith.cmpi eq, %159, %166 : vector<512x128xi32>
    %cst_24 = arith.constant 0.000000e+00 : f32
    %168 = vector.shape_cast %153 : vector<1x128xf32> to vector<1x128xf32>
    %169 = vector.broadcast %168 : vector<1x128xf32> to vector<512x128xf32>
    %170 = vector.broadcast %cst_24 : f32 to vector<512x128xf32>
    %171 = arith.select %167, %169, %170 : vector<512x128xi1>, vector<512x128xf32>
    %172 = vector.shape_cast %150 : vector<1x128xf32> to vector<1x128xf32>
    %173 = vector.broadcast %172 : vector<1x128xf32> to vector<512x128xf32>
    %174 = arith.select %165, %173, %171 : vector<512x128xi1>, vector<512x128xf32>
    %175 = vector.shape_cast %145 : vector<1x128xf32> to vector<1x128xf32>
    %176 = vector.broadcast %175 : vector<1x128xf32> to vector<512x128xf32>
    %177 = arith.select %163, %176, %174 : vector<512x128xi1>, vector<512x128xf32>
    %178 = vector.shape_cast %140 : vector<1x128xf32> to vector<1x128xf32>
    %179 = vector.broadcast %178 : vector<1x128xf32> to vector<512x128xf32>
    %180 = arith.select %161, %179, %177 : vector<512x128xi1>, vector<512x128xf32>
    %c0_25 = arith.constant 0 : index
    %c0_26 = arith.constant 0 : index
    %c0_27 = arith.constant 0 : index
    %181 = vector.load %arg3[%c0_25, %c0_26, %c0_27] : memref<1x32x512xf32, #tpu.memory_space<vmem>>, vector<1x32x512xf32>
    %182 = vector.shape_cast %181 : vector<1x32x512xf32> to vector<32x512xf32>
    %183 = arith.truncf %182 : vector<32x512xf32> to vector<32x512xbf16>
    %184 = arith.truncf %180 : vector<512x128xf32> to vector<512x128xbf16>
    %cst_28 = arith.constant dense<0.000000e+00> : vector<32x128xf32>
    %185 = tpu.matmul %183, %184, %cst_28 {dimension_numbers = #tpu.dot_dimension_numbers<[1], [0], [0], [1], [0, 0, 1, 1], [], []>} : vector<32x512xbf16>, vector<512x128xbf16>, vector<32x128xf32> -> vector<32x128xf32>
    %c0_29 = arith.constant 0 : index
    %c0_30 = arith.constant 0 : index
    %c0_31 = arith.constant 0 : index
    %c0_32 = arith.constant 0 : index
    %186 = vector.load %arg5[%c0_29, %c0_30, %c0_31, %c0_32] : memref<1x2x32x128xf32, #tpu.memory_space<vmem>>, vector<1x1x32x128xf32>
    %187 = vector.shape_cast %186 : vector<1x1x32x128xf32> to vector<32x128xf32>
    %188 = vector.shape_cast %185 : vector<32x128xf32> to vector<1x1x32x128xf32>
    tpu.vector_store %arg5[%c0_29, %c0_30, %c0_31, %c0_32], %188 {strides = array<i32>} : memref<1x2x32x128xf32, #tpu.memory_space<vmem>>, vector<1x1x32x128xf32>,
    %189 = arith.index_cast %arg0 : i32 to index
    %c16 = arith.constant 16 : index
    %190 = memref.load %arg2[%189, %c16] : memref<3x32xf32, #tpu.memory_space<smem>>
    %191 = vector.broadcast %190 : f32 to vector<1x128xf32>
    %192 = arith.mulf %191, %11 : vector<1x128xf32>
    %193 = arith.index_cast %arg0 : i32 to index
    %c17 = arith.constant 17 : index
    %194 = memref.load %arg2[%193, %c17] : memref<3x32xf32, #tpu.memory_space<smem>>
    %195 = vector.broadcast %194 : f32 to vector<1x128xf32>
    %196 = arith.mulf %195, %16 : vector<1x128xf32>
    %197 = arith.addf %192, %196 : vector<1x128xf32>
    %198 = arith.index_cast %arg0 : i32 to index
    %c18 = arith.constant 18 : index
    %199 = memref.load %arg2[%198, %c18] : memref<3x32xf32, #tpu.memory_space<smem>>
    %200 = vector.broadcast %199 : f32 to vector<1x128xf32>
    %201 = arith.mulf %200, %21 : vector<1x128xf32>
    %202 = arith.addf %197, %201 : vector<1x128xf32>
    %203 = arith.index_cast %arg0 : i32 to index
    %c19 = arith.constant 19 : index
    %204 = memref.load %arg2[%203, %c19] : memref<3x32xf32, #tpu.memory_space<smem>>
    %205 = vector.broadcast %204 : f32 to vector<1x128xf32>
    %206 = arith.addf %202, %205 : vector<1x128xf32>
    %207 = arith.index_cast %arg0 : i32 to index
    %c20 = arith.constant 20 : index
    %208 = memref.load %arg2[%207, %c20] : memref<3x32xf32, #tpu.memory_space<smem>>
    %209 = vector.broadcast %208 : f32 to vector<1x128xf32>
    %210 = arith.mulf %209, %11 : vector<1x128xf32>
    %211 = arith.index_cast %arg0 : i32 to index
    %c21 = arith.constant 21 : index
    %212 = memref.load %arg2[%211, %c21] : memref<3x32xf32, #tpu.memory_space<smem>>
    %213 = vector.broadcast %212 : f32 to vector<1x128xf32>
    %214 = arith.mulf %213, %16 : vector<1x128xf32>
    %215 = arith.addf %210, %214 : vector<1x128xf32>
    %216 = arith.index_cast %arg0 : i32 to index
    %c22 = arith.constant 22 : index
    %217 = memref.load %arg2[%216, %c22] : memref<3x32xf32, #tpu.memory_space<smem>>
    %218 = vector.broadcast %217 : f32 to vector<1x128xf32>
    %219 = arith.mulf %218, %21 : vector<1x128xf32>
    %220 = arith.addf %215, %219 : vector<1x128xf32>
    %221 = arith.index_cast %arg0 : i32 to index
    %c23 = arith.constant 23 : index
    %222 = memref.load %arg2[%221, %c23] : memref<3x32xf32, #tpu.memory_space<smem>>
    %223 = vector.broadcast %222 : f32 to vector<1x128xf32>
    %224 = arith.addf %220, %223 : vector<1x128xf32>
    %225 = arith.index_cast %arg0 : i32 to index
    %c24 = arith.constant 24 : index
    %226 = memref.load %arg2[%225, %c24] : memref<3x32xf32, #tpu.memory_space<smem>>
    %227 = vector.broadcast %226 : f32 to vector<1x128xf32>
    %228 = arith.mulf %227, %11 : vector<1x128xf32>
    %229 = arith.index_cast %arg0 : i32 to index
    %c25 = arith.constant 25 : index
    %230 = memref.load %arg2[%229, %c25] : memref<3x32xf32, #tpu.memory_space<smem>>
    %231 = vector.broadcast %230 : f32 to vector<1x128xf32>
    %232 = arith.mulf %231, %16 : vector<1x128xf32>
    %233 = arith.addf %228, %232 : vector<1x128xf32>
    %234 = arith.index_cast %arg0 : i32 to index
    %c26 = arith.constant 26 : index
    %235 = memref.load %arg2[%234, %c26] : memref<3x32xf32, #tpu.memory_space<smem>>
    %236 = vector.broadcast %235 : f32 to vector<1x128xf32>
    %237 = arith.mulf %236, %21 : vector<1x128xf32>
    %238 = arith.addf %233, %237 : vector<1x128xf32>
    %239 = arith.index_cast %arg0 : i32 to index
    %c27 = arith.constant 27 : index
    %240 = memref.load %arg2[%239, %c27] : memref<3x32xf32, #tpu.memory_space<smem>>
    %241 = vector.broadcast %240 : f32 to vector<1x128xf32>
    %242 = arith.addf %238, %241 : vector<1x128xf32>
    %cst_33 = arith.constant 5.000000e-02 : f32
    %243 = vector.broadcast %cst_33 : f32 to vector<1x128xf32>
    %244 = arith.maximumf %242, %243 : vector<1x128xf32>
    %cst_34 = arith.constant 0.000000e+00 : f32
    %245 = vector.broadcast %cst_34 : f32 to vector<1x128xf32>
    %246 = arith.cmpf oge, %206, %245 : vector<1x128xf32>
    %cst_35 = arith.constant 1.600000e+01 : f32
    %247 = vector.broadcast %cst_35 : f32 to vector<1x128xf32>
    %248 = arith.mulf %247, %244 : vector<1x128xf32>
    %249 = arith.cmpf olt, %206, %248 : vector<1x128xf32>
    %250 = arith.andi %246, %249 : vector<1x128xi1>
    %cst_36 = arith.constant 0.000000e+00 : f32
    %251 = vector.broadcast %cst_36 : f32 to vector<1x128xf32>
    %252 = arith.cmpf oge, %224, %251 : vector<1x128xf32>
    %253 = arith.andi %250, %252 : vector<1x128xi1>
    %cst_37 = arith.constant 8.000000e+00 : f32
    %254 = vector.broadcast %cst_37 : f32 to vector<1x128xf32>
    %255 = arith.mulf %254, %244 : vector<1x128xf32>
    %256 = arith.cmpf olt, %224, %255 : vector<1x128xf32>
    %257 = arith.andi %253, %256 : vector<1x128xi1>
    %258 = arith.extui %257 : vector<1x128xi1> to vector<1x128xi32>
    %259 = arith.sitofp %258 : vector<1x128xi32> to vector<1x128xf32>
    %260 = tpu.reciprocal %244 {approx = true} : vector<1x128xf32> -> vector<1x128xf32>
    %261 = arith.mulf %244, %260 : vector<1x128xf32>
    %cst_38 = arith.constant 2.000000e+00 : f32
    %262 = vector.broadcast %cst_38 : f32 to vector<1x128xf32>
    %263 = arith.subf %262, %261 : vector<1x128xf32>
    %264 = arith.mulf %260, %263 : vector<1x128xf32>
    %265 = arith.mulf %206, %264 : vector<1x128xf32>
    %266 = arith.mulf %224, %264 : vector<1x128xf32>
    %267 = math.floor %265 : vector<1x128xf32>
    %268 = math.floor %266 : vector<1x128xf32>
    %269 = arith.subf %265, %267 : vector<1x128xf32>
    %270 = arith.subf %266, %268 : vector<1x128xf32>
    %271 = arith.fptosi %267 : vector<1x128xf32> to vector<1x128xi32>
    %272 = arith.fptosi %268 : vector<1x128xf32> to vector<1x128xi32>
    %c0_i32_39 = arith.constant 0 : i32
    %273 = vector.broadcast %c0_i32_39 : i32 to vector<1x128xi32>
    %274 = arith.cmpi sge, %271, %273 : vector<1x128xi32>
    %c16_i32_40 = arith.constant 16 : i32
    %275 = vector.broadcast %c16_i32_40 : i32 to vector<1x128xi32>
    %276 = arith.cmpi slt, %271, %275 : vector<1x128xi32>
    %277 = arith.andi %274, %276 : vector<1x128xi1>
    %278 = arith.extui %277 : vector<1x128xi1> to vector<1x128xi32>
    %279 = arith.sitofp %278 : vector<1x128xi32> to vector<1x128xf32>
    %c-1_i32_41 = arith.constant -1 : i32
    %280 = vector.broadcast %c-1_i32_41 : i32 to vector<1x128xi32>
    %281 = arith.cmpi sge, %271, %280 : vector<1x128xi32>
    %c15_i32_42 = arith.constant 15 : i32
    %282 = vector.broadcast %c15_i32_42 : i32 to vector<1x128xi32>
    %283 = arith.cmpi slt, %271, %282 : vector<1x128xi32>
    %284 = arith.andi %281, %283 : vector<1x128xi1>
    %285 = arith.extui %284 : vector<1x128xi1> to vector<1x128xi32>
    %286 = arith.sitofp %285 : vector<1x128xi32> to vector<1x128xf32>
    %c0_i32_43 = arith.constant 0 : i32
    %287 = vector.broadcast %c0_i32_43 : i32 to vector<1x128xi32>
    %288 = arith.cmpi sge, %272, %287 : vector<1x128xi32>
    %c8_i32 = arith.constant 8 : i32
    %289 = vector.broadcast %c8_i32 : i32 to vector<1x128xi32>
    %290 = arith.cmpi slt, %272, %289 : vector<1x128xi32>
    %291 = arith.andi %288, %290 : vector<1x128xi1>
    %292 = arith.extui %291 : vector<1x128xi1> to vector<1x128xi32>
    %293 = arith.sitofp %292 : vector<1x128xi32> to vector<1x128xf32>
    %c-1_i32_44 = arith.constant -1 : i32
    %294 = vector.broadcast %c-1_i32_44 : i32 to vector<1x128xi32>
    %295 = arith.cmpi sge, %272, %294 : vector<1x128xi32>
    %c7_i32 = arith.constant 7 : i32
    %296 = vector.broadcast %c7_i32 : i32 to vector<1x128xi32>
    %297 = arith.cmpi slt, %272, %296 : vector<1x128xi32>
    %298 = arith.andi %295, %297 : vector<1x128xi1>
    %299 = arith.extui %298 : vector<1x128xi1> to vector<1x128xi32>
    %300 = arith.sitofp %299 : vector<1x128xi32> to vector<1x128xf32>
    %cst_45 = arith.constant 1.000000e+00 : f32
    %301 = vector.broadcast %cst_45 : f32 to vector<1x128xf32>
    %302 = arith.subf %301, %269 : vector<1x128xf32>
    %cst_46 = arith.constant 1.000000e+00 : f32
    %303 = vector.broadcast %cst_46 : f32 to vector<1x128xf32>
    %304 = arith.subf %303, %270 : vector<1x128xf32>
    %305 = arith.mulf %302, %304 : vector<1x128xf32>
    %306 = arith.mulf %279, %293 : vector<1x128xf32>
    %307 = arith.mulf %305, %306 : vector<1x128xf32>
    %cst_47 = arith.constant 1.000000e+00 : f32
    %308 = vector.broadcast %cst_47 : f32 to vector<1x128xf32>
    %309 = arith.subf %308, %270 : vector<1x128xf32>
    %310 = arith.mulf %269, %309 : vector<1x128xf32>
    %311 = arith.mulf %286, %293 : vector<1x128xf32>
    %312 = arith.mulf %310, %311 : vector<1x128xf32>
    %cst_48 = arith.constant 1.000000e+00 : f32
    %313 = vector.broadcast %cst_48 : f32 to vector<1x128xf32>
    %314 = arith.subf %313, %269 : vector<1x128xf32>
    %315 = arith.mulf %314, %270 : vector<1x128xf32>
    %316 = arith.mulf %279, %300 : vector<1x128xf32>
    %317 = arith.mulf %315, %316 : vector<1x128xf32>
    %318 = arith.mulf %269, %270 : vector<1x128xf32>
    %319 = arith.mulf %286, %300 : vector<1x128xf32>
    %320 = arith.mulf %318, %319 : vector<1x128xf32>
    %321 = tpu.iota {dimensions = array<i32: 0>} : vector<128x128xi32>
    %c16_i32_49 = arith.constant 16 : i32
    %322 = vector.broadcast %c16_i32_49 : i32 to vector<1x128xi32>
    %323 = arith.muli %272, %322 : vector<1x128xi32>
    %324 = arith.addi %323, %271 : vector<1x128xi32>
    %325 = vector.broadcast %324 : vector<1x128xi32> to vector<128x128xi32>
    %326 = arith.subi %321, %325 : vector<128x128xi32>
    %c0_i32_50 = arith.constant 0 : i32
    %327 = vector.broadcast %c0_i32_50 : i32 to vector<128x128xi32>
    %328 = arith.cmpi eq, %326, %327 : vector<128x128xi32>
    %c1_i32_51 = arith.constant 1 : i32
    %329 = vector.broadcast %c1_i32_51 : i32 to vector<128x128xi32>
    %330 = arith.cmpi eq, %326, %329 : vector<128x128xi32>
    %c16_i32_52 = arith.constant 16 : i32
    %331 = vector.broadcast %c16_i32_52 : i32 to vector<128x128xi32>
    %332 = arith.cmpi eq, %326, %331 : vector<128x128xi32>
    %c17_i32 = arith.constant 17 : i32
    %333 = vector.broadcast %c17_i32 : i32 to vector<128x128xi32>
    %334 = arith.cmpi eq, %326, %333 : vector<128x128xi32>
    %cst_53 = arith.constant 0.000000e+00 : f32
    %335 = vector.shape_cast %320 : vector<1x128xf32> to vector<1x128xf32>
    %336 = vector.broadcast %335 : vector<1x128xf32> to vector<128x128xf32>
    %337 = vector.broadcast %cst_53 : f32 to vector<128x128xf32>
    %338 = arith.select %334, %336, %337 : vector<128x128xi1>, vector<128x128xf32>
    %339 = vector.shape_cast %317 : vector<1x128xf32> to vector<1x128xf32>
    %340 = vector.broadcast %339 : vector<1x128xf32> to vector<128x128xf32>
    %341 = arith.select %332, %340, %338 : vector<128x128xi1>, vector<128x128xf32>
    %342 = vector.shape_cast %312 : vector<1x128xf32> to vector<1x128xf32>
    %343 = vector.broadcast %342 : vector<1x128xf32> to vector<128x128xf32>
    %344 = arith.select %330, %343, %341 : vector<128x128xi1>, vector<128x128xf32>
    %345 = vector.shape_cast %307 : vector<1x128xf32> to vector<1x128xf32>
    %346 = vector.broadcast %345 : vector<1x128xf32> to vector<128x128xf32>
    %347 = arith.select %328, %346, %344 : vector<128x128xi1>, vector<128x128xf32>
    %c0_54 = arith.constant 0 : index
    %c0_55 = arith.constant 0 : index
    %c0_56 = arith.constant 0 : index
    %348 = vector.load %arg4[%c0_54, %c0_55, %c0_56] : memref<1x32x128xf32, #tpu.memory_space<vmem>>, vector<1x32x128xf32>
    %349 = vector.shape_cast %348 : vector<1x32x128xf32> to vector<32x128xf32>
    %350 = arith.truncf %349 : vector<32x128xf32> to vector<32x128xbf16>
    %351 = arith.truncf %347 : vector<128x128xf32> to vector<128x128xbf16>
    %cst_57 = arith.constant dense<0.000000e+00> : vector<32x128xf32>
    %352 = tpu.matmul %350, %351, %cst_57 {dimension_numbers = #tpu.dot_dimension_numbers<[1], [0], [0], [1], [0, 0, 1, 1], [], []>} : vector<32x128xbf16>, vector<128x128xbf16>, vector<32x128xf32> -> vector<32x128xf32>
    %c0_58 = arith.constant 0 : index
    %c1_59 = arith.constant 1 : index
    %c0_60 = arith.constant 0 : index
    %c0_61 = arith.constant 0 : index
    %353 = vector.load %arg5[%c0_58, %c1_59, %c0_60, %c0_61] : memref<1x2x32x128xf32, #tpu.memory_space<vmem>>, vector<1x1x32x128xf32>
    %354 = vector.shape_cast %353 : vector<1x1x32x128xf32> to vector<32x128xf32>
    %355 = vector.shape_cast %352 : vector<32x128xf32> to vector<1x1x32x128xf32>
    tpu.vector_store %arg5[%c0_58, %c1_59, %c0_60, %c0_61], %355 {strides = array<i32>} : memref<1x2x32x128xf32, #tpu.memory_space<vmem>>, vector<1x1x32x128xf32>,
    %356 = tpu.concatenate %92, %259 in 0 : vector<1x128xf32>, vector<1x128xf32> -> vector<2x128xf32>
    %c0_62 = arith.constant 0 : index
    %c0_63 = arith.constant 0 : index
    %c0_64 = arith.constant 0 : index
    %357 = vector.load %arg6[%c0_62, %c0_63, %c0_64] : memref<1x2x128xf32, #tpu.memory_space<vmem>>, vector<1x2x128xf32>
    %358 = vector.shape_cast %357 : vector<1x2x128xf32> to vector<2x128xf32>
    %359 = vector.shape_cast %356 : vector<2x128xf32> to vector<1x2x128xf32>
    tpu.vector_store %arg6[%c0_62, %c0_63, %c0_64], %359 {strides = array<i32>} : memref<1x2x128xf32, #tpu.memory_space<vmem>>, vector<1x2x128xf32>,
    return
  }
  func.func @transform_0(%arg0: i32) -> (i32, i32, i32) {
    %c0_i32 = arith.constant 0 : i32
    %c0_i32_0 = arith.constant 0 : i32
    %c0_i32_1 = arith.constant 0 : i32
    %c0_i32_2 = arith.constant 0 : i32
    return %c0_i32, %c0_i32_0, %c0_i32_1 : i32, i32, i32
  }
  func.func @transform_1(%arg0: i32) -> (i32, i32) {
    %c0_i32 = arith.constant 0 : i32
    %c0_i32_0 = arith.constant 0 : i32
    %c0_i32_1 = arith.constant 0 : i32
    return %c0_i32, %c0_i32_0 : i32, i32
  }
  func.func @transform_2(%arg0: i32) -> (i32, i32, i32) {
    %c0_i32 = arith.constant 0 : i32
    %c0_i32_0 = arith.constant 0 : i32
    %c0_i32_1 = arith.constant 0 : i32
    return %arg0, %c0_i32, %c0_i32_0 : i32, i32, i32
  }
  func.func @transform_3(%arg0: i32) -> (i32, i32, i32) {
    %c0_i32 = arith.constant 0 : i32
    %c0_i32_0 = arith.constant 0 : i32
    %c0_i32_1 = arith.constant 0 : i32
    return %arg0, %c0_i32, %c0_i32_0 : i32, i32, i32
  }
  func.func @transform_4(%arg0: i32) -> (i32, i32, i32, i32) {
    %c0_i32 = arith.constant 0 : i32
    %c0_i32_0 = arith.constant 0 : i32
    %c0_i32_1 = arith.constant 0 : i32
    %c0_i32_2 = arith.constant 0 : i32
    return %arg0, %c0_i32, %c0_i32_0, %c0_i32_1 : i32, i32, i32, i32
  }
  func.func @transform_5(%arg0: i32) -> (i32, i32, i32) {
    %c0_i32 = arith.constant 0 : i32
    %c0_i32_0 = arith.constant 0 : i32
    %c0_i32_1 = arith.constant 0 : i32
    return %arg0, %c0_i32, %c0_i32_0 : i32, i32, i32
  }
}

</mosaic_0001>

<llo_original>
// kernel: tpu_custom_call.1
$region0: #{tpu_custom_call.1}
  #allocation0 [shape = 'u32[]', space=smem, size = 0x4, offset = 0x4, fixed_abs, tag = 'smem constant byte address 0x4 - core index']
  #allocation1 [shape = 'u32[144,128]{1,0:T(1,128)}', space=vmem, size = 0x12000, scoped, tag = 'internal scratch']
  %s0 = inlined_call_operand.vmem [shape: f32[1,3,128], index: 0, kind: input, shape index: {}]
  %s1 = inlined_call_operand.vmem [shape: f32[3,32], index: 1, kind: input, shape index: {}]
  %s2 = inlined_call_operand.hbm [shape: f32[3,32,512], index: 2, kind: input, shape index: {}]
  %s3 = inlined_call_operand.hbm [shape: f32[3,32,128], index: 3, kind: input, shape index: {}]
  %s4 = inlined_call_operand.hbm [shape: f32[3,2,32,128], index: 4, kind: output, shape index: {0}]
  %s5 = inlined_call_operand.hbm [shape: f32[3,2,128], index: 5, kind: output, shape index: {1}]
  %6 = xla_tuple %s4, %s5
  %s7 = sld [smem:[#allocation0]]
  $region69: #{tpu_custom_call.1} parent=0
    _
  %s9 = ssub.s32 1, %s7
  %s10 = scalar_select 0, %s9, %s7
  $region1: #{tpu_custom_call.1} parent=0
    #allocation2 [shape = 'u8[2048]{0}', space=smem, size = 0x800, scoped, tag = 'input window, operand 1, single buffered']
    #allocation3 [shape = 's32[2]{0}', space=sflag, size = 0x8, scoped, tag = 'scoped memory for tpu_custom_call.1']
    #allocation4 [shape = 's32[2]{0}', space=sflag, size = 0x8, scoped, tag = 'scoped memory for tpu_custom_call.1']
    #allocation5 [shape = 's32[2]{0}', space=sflag, size = 0x8, scoped, tag = 'scoped memory for tpu_custom_call.1']
    #allocation6 [shape = 'u8[131072]{0}', space=vmem, size = 0x20000, scoped, tag = 'input window, operand 2']
    #allocation7 [shape = 'u8[32768]{0}', space=vmem, size = 0x8000, scoped, tag = 'input window, operand 3']
    #allocation8 [shape = 's32[2]{0}', space=sflag, size = 0x8, scoped, tag = 'scoped memory for tpu_custom_call.1']
    #allocation9 [shape = 'u8[65536]{0}', space=vmem, size = 0x10000, scoped, tag = 'output window, operand 0']
    #allocation10 [shape = 'u8[2048]{0}', space=vmem, size = 0x800, scoped, tag = 'output window, operand 1']
    #allocation11 [shape = 's32[2]{0}', space=sflag, size = 0x8, scoped, tag = 'scoped memory for tpu_custom_call.1']
    %11 = vsyncpa [#allocation5], 0
    %12 = vsyncpa [#allocation3], 0
    %s13 = scalar_lea.sflag [#allocation3], 1
    %14 = vsyncpa %s13, 0
    %15 = vsyncpa [#allocation8], 0
    %s16 = scalar_lea.sflag [#allocation8], 1
    %17 = vsyncpa %s16, 0
    %18 = vsyncpa [#allocation4], 0
    %s19 = scalar_lea.sflag [#allocation4], 1
    %20 = vsyncpa %s19, 0
    %21 = vsyncpa [#allocation11], 0
    %s22 = scalar_lea.sflag [#allocation11], 1
    %23 = vsyncpa %s22, 0
    loop: start=0, step=1, limit=5
    $region2: #{tpu_custom_call.1} parent=1 // loop_pre_header
      _
    $region3: #{tpu_custom_call.1} parent=1 // loop_header
      %s25 = sphi 0, %s29
      %p26 = scmp.ge.s32.totalorder %s25, 5
      %s33 = sphi 0, %s33
      %s35 = sphi 0, %s33
      %s36 = sphi 0, %s35
      %s50 = sphi 0, %s36
      %s54 = sphi 0, %s54
      %s56 = sphi 0, %s54
      %s57 = sphi 0, %s56
      %s71 = sphi 0, %s57
      %s77 = sphi 0, %s79
      %s80 = sphi 0, %s77
      %s81 = sphi 0, %s80
      %s97 = sphi 0, %s81
      %s103 = sphi 0, %s105
      %s106 = sphi 0, %s103
      %s107 = sphi 0, %s106
      %s123 = sphi 0, %s107
      %s129 = sphi 0, %s131
      %s132 = sphi 0, %s129
      %s133 = sphi 0, %s132
      %s149 = sphi 0, %s133
      %s155 = sphi 0, %s157
      %s158 = sphi 0, %s155
      %s159 = sphi 0, %s158
      %s175 = sphi 0, %s159
    $region4: #{tpu_custom_call.1} parent=1 // loop_header_branch
      %28 = sbr.rel (%p26) target = $region8
    $region5: #{tpu_custom_call.1} parent=1 // loop_body
      %s30 = ssub.s32 %s25, 1
      %s31 = ssub.s32 %s25, 2
      %s32 = sadd.s32 %s25, 1
      %s34 = sadd.s32 %s33, 1
      %p37 = scmp.eq.s32.totalorder %s25, 2
      %p38 = scmp.ne.s32.totalorder %s33, %s35
      %p39 = scmp.eq.s32.totalorder %s25, 0
      %p40 = por %p38, %p39
      %p41 = scmp.ne.s32.totalorder %s33, %s35
      %p42 = scmp.eq.s32.totalorder %s30, 2
      %p43 = por %p41, %p42
      %p44 = scmp.ne.s32.totalorder %s35, %s36
      %p45 = scmp.eq.s32.totalorder %s30, 0
      %p46 = por %p44, %p45
      %p47 = scmp.ne.s32.totalorder %s35, %s36
      %p48 = scmp.eq.s32.totalorder %s31, 2
      %p49 = por %p47, %p48
      %p51 = scmp.ne.s32.totalorder %s36, %s50
      %p52 = scmp.eq.s32.totalorder %s31, 0
      %p53 = por %p51, %p52
      %s55 = sadd.s32 %s54, 1
      %p58 = scmp.eq.s32.totalorder %s25, 2
      %p59 = scmp.ne.s32.totalorder %s54, %s56
      %p60 = scmp.eq.s32.totalorder %s25, 0
      %p61 = por %p59, %p60
      %p62 = scmp.ne.s32.totalorder %s54, %s56
      %p63 = scmp.eq.s32.totalorder %s30, 2
      %p64 = por %p62, %p63
      %p65 = scmp.ne.s32.totalorder %s56, %s57
      %p66 = scmp.eq.s32.totalorder %s30, 0
      %p67 = por %p65, %p66
      %p68 = scmp.ne.s32.totalorder %s56, %s57
      %p69 = scmp.eq.s32.totalorder %s31, 2
      %p70 = por %p68, %p69
      %p72 = scmp.ne.s32.totalorder %s57, %s71
      %p73 = scmp.eq.s32.totalorder %s31, 0
      %p74 = por %p72, %p73
      %s75 = ssub.s32 %s25, %s32
      %p76 = scmp.eq.s32.totalorder %s75, 0
      %s78 = sadd.s32 %s77, 1
      %s79 = scalar_select %p76, %s77, %s78
      %p82 = pneg %p76
      %p83 = scmp.eq.s32.totalorder %s25, 2
      %p84 = por %p82, %p83
      %p85 = scmp.ne.s32.totalorder %s77, %s80
      %p86 = scmp.eq.s32.totalorder %s25, 0
      %p87 = por %p85, %p86
      %p88 = scmp.ne.s32.totalorder %s77, %s80
      %p89 = scmp.eq.s32.totalorder %s30, 2
      %p90 = por %p88, %p89
      %p91 = scmp.ne.s32.totalorder %s80, %s81
      %p92 = scmp.eq.s32.totalorder %s30, 0
      %p93 = por %p91, %p92
      %p94 = scmp.ne.s32.totalorder %s80, %s81
      %p95 = scmp.eq.s32.totalorder %s31, 2
      %p96 = por %p94, %p95
      %p98 = scmp.ne.s32.totalorder %s81, %s97
      %p99 = scmp.eq.s32.totalorder %s31, 0
      %p100 = por %p98, %p99
      %s101 = ssub.s32 %s25, %s32
      %p102 = scmp.eq.s32.totalorder %s101, 0
      %s104 = sadd.s32 %s103, 1
      %s105 = scalar_select %p102, %s103, %s104
      %p108 = pneg %p102
      %p109 = scmp.eq.s32.totalorder %s25, 2
      %p110 = por %p108, %p109
      %p111 = scmp.ne.s32.totalorder %s103, %s106
      %p112 = scmp.eq.s32.totalorder %s25, 0
      %p113 = por %p111, %p112
      %p114 = scmp.ne.s32.totalorder %s103, %s106
      %p115 = scmp.eq.s32.totalorder %s30, 2
      %p116 = por %p114, %p115
      %p117 = scmp.ne.s32.totalorder %s106, %s107
      %p118 = scmp.eq.s32.totalorder %s30, 0
      %p119 = por %p117, %p118
      %p120 = scmp.ne.s32.totalorder %s106, %s107
      %p121 = scmp.eq.s32.totalorder %s31, 2
      %p122 = por %p120, %p121
      %p124 = scmp.ne.s32.totalorder %s107, %s123
      %p125 = scmp.eq.s32.totalorder %s31, 0
      %p126 = por %p124, %p125
      %s127 = ssub.s32 %s25, %s32
      %p128 = scmp.eq.s32.totalorder %s127, 0
      %s130 = sadd.s32 %s129, 1
      %s131 = scalar_select %p128, %s129, %s130
      %p134 = pneg %p128
      %p135 = scmp.eq.s32.totalorder %s25, 2
      %p136 = por %p134, %p135
      %p137 = scmp.ne.s32.totalorder %s129, %s132
      %p138 = scmp.eq.s32.totalorder %s25, 0
      %p139 = por %p137, %p138
      %p140 = scmp.ne.s32.totalorder %s129, %s132
      %p141 = scmp.eq.s32.totalorder %s30, 2
      %p142 = por %p140, %p141
      %p143 = scmp.ne.s32.totalorder %s132, %s133
      %p144 = scmp.eq.s32.totalorder %s30, 0
      %p145 = por %p143, %p144
      %p146 = scmp.ne.s32.totalorder %s132, %s133
      %p147 = scmp.eq.s32.totalorder %s31, 2
      %p148 = por %p146, %p147
      %p150 = scmp.ne.s32.totalorder %s133, %s149
      %p151 = scmp.eq.s32.totalorder %s31, 0
      %p152 = por %p150, %p151
      %s153 = ssub.s32 %s25, %s32
      %p154 = scmp.eq.s32.totalorder %s153, 0
      %s156 = sadd.s32 %s155, 1
      %s157 = scalar_select %p154, %s155, %s156
      %p160 = pneg %p154
      %p161 = scmp.eq.s32.totalorder %s25, 2
      %p162 = por %p160, %p161
      %p163 = scmp.ne.s32.totalorder %s155, %s158
      %p164 = scmp.eq.s32.totalorder %s25, 0
      %p165 = por %p163, %p164
      %p166 = scmp.ne.s32.totalorder %s155, %s158
      %p167 = scmp.eq.s32.totalorder %s30, 2
      %p168 = por %p166, %p167
      %p169 = scmp.ne.s32.totalorder %s158, %s159
      %p170 = scmp.eq.s32.totalorder %s30, 0
      %p171 = por %p169, %p170
      %p172 = scmp.ne.s32.totalorder %s158, %s159
      %p173 = scmp.eq.s32.totalorder %s31, 2
      %p174 = por %p172, %p173
      %p176 = scmp.ne.s32.totalorder %s159, %s175
      %p177 = scmp.eq.s32.totalorder %s31, 0
      %p178 = por %p176, %p177
      %p179 = scmp.le.s32.totalorder 1, %s25
      %p180 = scmp.lt.s32.totalorder %s25, 4
      %p181 = pnand %p179, %p180
      %p182 = pneg %p181
      // Predicated region
      $region9: #{tpu_custom_call.1} parent=5 // pred_check
        _
      $region10: #{tpu_custom_call.1} parent=5 // pred_check_branch
        %184 = sbr.rel (%p181) target = $region12
      $region11: #{tpu_custom_call.1} parent=5 // pred_region
        %s185 = ssub.s32 %s25, 1
        // Predicated region
        $region13: #{tpu_custom_call.1} parent=11 // pred_check
          %p186 = pneg %p46
        $region14: #{tpu_custom_call.1} parent=11 // pred_check_branch
          %188 = sbr.rel (%p186) target = $region16
        $region15: #{tpu_custom_call.1} parent=11 // pred_region
          _
        $region16: #{tpu_custom_call.1} parent=11 // pred_fallthru
          _
        // Predicated region
        $region17: #{tpu_custom_call.1} parent=11 // pred_check
          %p189 = pneg %p67
        $region18: #{tpu_custom_call.1} parent=11 // pred_check_branch
          %191 = sbr.rel (%p189) target = $region20
        $region19: #{tpu_custom_call.1} parent=11 // pred_region
          %s193 = ssub.s32 64, 64
          %194 = vsyncadd [#allocation5], %s193
          %s196 = sshll.u32 %s1, 4
          %s197 = int_to_ptr.vmem [resolvable:$true] %s196
          %199 = dma.vmem_to_smem %s197, 64, [#allocation2], [#allocation5]
        $region20: #{tpu_custom_call.1} parent=11 // pred_fallthru
          _
      $region12: #{tpu_custom_call.1} parent=5 // pred_fallthru
        _
      %p200 = scmp.lt.s32.totalorder %s25, 3
      // Predicated region
      $region21: #{tpu_custom_call.1} parent=5 // pred_check
        %p201 = pneg %p200
      $region22: #{tpu_custom_call.1} parent=5 // pred_check_branch
        %203 = sbr.rel (%p201) target = $region24
      $region23: #{tpu_custom_call.1} parent=5 // pred_region
        // Predicated region
        $region25: #{tpu_custom_call.1} parent=23 // pred_check
          %p204 = pneg %p87
        $region26: #{tpu_custom_call.1} parent=23 // pred_check_branch
          %206 = sbr.rel (%p204) target = $region28
        $region27: #{tpu_custom_call.1} parent=23 // pred_region
          %s207 = sand.u32 %s77, 1
          %s208 = scalar_lea.sflag [#allocation3], %s207
          %s209 = sand.u32 %s77, 1
          %s210 = smul.addr %s209, 128
          %s211 = scalar_lea.vmem [#allocation6], %s210
          %s213 = ssub.s32 2048, 2048
          %214 = vsyncadd %s208, %s213
          %s215 = smul.addr %s25, 16
          %s216 = smul.addr %s215, 128
          %s217 = scalar_lea.hbm %s2, %s216
          %s218 = sshll.u32 %s211, 4
          %s219 = int_to_ptr.vmem [resolvable:$true] %s218
          %224 = dma.hbm_to_vmem [thread:$0]  %s217, 2048, %s219, %s208, 512, 512, 32
        $region28: #{tpu_custom_call.1} parent=23 // pred_fallthru
          _
        // Predicated region
        $region29: #{tpu_custom_call.1} parent=23 // pred_check
          %p225 = pneg %p113
        $region30: #{tpu_custom_call.1} parent=23 // pred_check_branch
          %227 = sbr.rel (%p225) target = $region32
        $region31: #{tpu_custom_call.1} parent=23 // pred_region
          %s228 = sand.u32 %s103, 1
          %s229 = scalar_lea.sflag [#allocation8], %s228
          %s230 = sand.u32 %s103, 1
          %s231 = smul.addr %s230, 32
          %s232 = scalar_lea.vmem [#allocation7], %s231
          %s234 = ssub.s32 512, 512
          %235 = vsyncadd %s229, %s234
          %s236 = smul.addr %s25, 4
          %s237 = smul.addr %s236, 128
          %s238 = scalar_lea.hbm %s3, %s237
          %s239 = sshll.u32 %s232, 4
          %s240 = int_to_ptr.vmem [resolvable:$true] %s239
          %245 = dma.hbm_to_vmem [thread:$0]  %s238, 512, %s240, %s229, 128, 128, 8
        $region32: #{tpu_custom_call.1} parent=23 // pred_fallthru
          _
      $region24: #{tpu_custom_call.1} parent=5 // pred_fallthru
        _
      %p246 = scmp.le.s32.totalorder 1, %s25
      %p247 = scmp.lt.s32.totalorder %s25, 4
      %p248 = pnand %p246, %p247
      %p249 = pneg %p248
      // Predicated region
      $region33: #{tpu_custom_call.1} parent=5 // pred_check
        _
      $region34: #{tpu_custom_call.1} parent=5 // pred_check_branch
        %251 = sbr.rel (%p248) target = $region36
      $region35: #{tpu_custom_call.1} parent=5 // pred_region
        %s252 = ssub.s32 %s25, 1
        // Predicated region
        $region37: #{tpu_custom_call.1} parent=35 // pred_check
          %p253 = pneg %p67
        $region38: #{tpu_custom_call.1} parent=35 // pred_check_branch
          %255 = sbr.rel (%p253) target = $region40
        $region39: #{tpu_custom_call.1} parent=35 // pred_region
          %256 = dma.done [#allocation5], 64
        $region40: #{tpu_custom_call.1} parent=35 // pred_fallthru
          _
        %s257 = sand.u32 %s80, 1
        %s258 = scalar_lea.sflag [#allocation3], %s257
        %s259 = sand.u32 %s80, 1
        %s260 = smul.addr %s259, 128
        %s261 = scalar_lea.vmem [#allocation6], %s260
        // Predicated region
        $region41: #{tpu_custom_call.1} parent=35 // pred_check
          %p262 = pneg %p93
        $region42: #{tpu_custom_call.1} parent=35 // pred_check_branch
          %264 = sbr.rel (%p262) target = $region44
        $region43: #{tpu_custom_call.1} parent=35 // pred_region
          %265 = dma.done %s258, 2048
        $region44: #{tpu_custom_call.1} parent=35 // pred_fallthru
          _
        %s266 = sand.u32 %s106, 1
        %s267 = scalar_lea.sflag [#allocation8], %s266
        %s268 = sand.u32 %s106, 1
        %s269 = smul.addr %s268, 32
        %s270 = scalar_lea.vmem [#allocation7], %s269
        // Predicated region
        $region45: #{tpu_custom_call.1} parent=35 // pred_check
          %p271 = pneg %p119
        $region46: #{tpu_custom_call.1} parent=35 // pred_check_branch
          %273 = sbr.rel (%p271) target = $region48
        $region47: #{tpu_custom_call.1} parent=35 // pred_region
          %274 = dma.done %s267, 512
        $region48: #{tpu_custom_call.1} parent=35 // pred_fallthru
          _
        %275 = sfence
        %p276 = pneg %p46
        %p277 = pneg %p43
        %p278 = pneg %p67
        %p279 = pneg %p64
        %s280 = sand.u32 %s80, 1
        %s281 = scalar_lea.sflag [#allocation3], %s280
        %s282 = sand.u32 %s80, 1
        %s283 = smul.addr %s282, 128
        %s284 = scalar_lea.vmem [#allocation6], %s283
        %p285 = pneg %p93
        %p286 = pneg %p90
        %s287 = sand.u32 %s106, 1
        %s288 = scalar_lea.sflag [#allocation8], %s287
        %s289 = sand.u32 %s106, 1
        %s290 = smul.addr %s289, 32
        %s291 = scalar_lea.vmem [#allocation7], %s290
        %p292 = pneg %p119
        %p293 = pneg %p116
        %p294 = pneg %p145
        %p295 = pneg %p142
        %s296 = sand.u32 %s132, 1
        %s297 = scalar_lea.sflag [#allocation4], %s296
        %s298 = sand.u32 %s132, 1
        %s299 = smul.addr %s298, 64
        %s300 = scalar_lea.vmem [#allocation9], %s299
        %p301 = pneg %p171
        %p302 = pneg %p168
        %s303 = sand.u32 %s158, 1
        %s304 = scalar_lea.sflag [#allocation11], %s303
        %s305 = sand.u32 %s158, 1
        %s306 = smul.addr %s305, 2
        %s307 = scalar_lea.vmem [#allocation10], %s306
        %v309 = vld [vmem:[%s0] sm:$0x7]
        %v310 = vxor.u32 %v309, 2147483648
        %v311 = vmul.f32 %v310, 1.442695
        %v312 = vpow.pop %v311
        %v313 = vadd.f32 %v312, 1.0
        %v314 = vrcp.pop %v313
        %v315 = vmul.f32 1.0, %v314
        %v316 = vmul.f32 %v315, 4.0
        %v317 = vadd.f32 %v316, -2.0
        %v318 = vmul.f32 %v315, 3.5
        %v319 = vadd.f32 %v318, 0.5
        %s320 = smul.u32 %s30, 128
        %s321 = sld [smem:[#allocation2 + %s320]]
        %v322 = vstv %s321
        %v323 = vmul.f32 %v322, %v317
        %s324 = sadd.s32 %s320, 1
        %s325 = sld [smem:[#allocation2 + %s324]]
        %v326 = vstv %s325
        %v327 = vmul.f32 %v326, %v317
        %v329 = vrot.slane %v327, 1
        %v331 = vadd.f32 %v323, %v329
        %s332 = sadd.s32 %s320, 2
        %s333 = sld [smem:[#allocation2 + %s332]]
        %v334 = vstv %s333
        %v335 = vmul.f32 %v334, %v319
        %v337 = vrot.slane %v335, 2
        %v339 = vadd.f32 %v331, %v337
        %s340 = sadd.s32 %s320, 3
        %s341 = sld [smem:[#allocation2 + %s340]]
        %v342 = vstv %s341
        %v343 = vadd.f32 %v339, %v342
        %s344 = sadd.s32 %s320, 4
        %s345 = sld [smem:[#allocation2 + %s344]]
        %v346 = vstv %s345
        %v347 = vmul.f32 %v346, %v317
        %s348 = sadd.s32 %s320, 5
        %s349 = sld [smem:[#allocation2 + %s348]]
        %v350 = vstv %s349
        %v351 = vmul.f32 %v350, %v317
        %v353 = vrot.slane %v351, 1
        %v355 = vadd.f32 %v347, %v353
        %s356 = sadd.s32 %s320, 6
        %s357 = sld [smem:[#allocation2 + %s356]]
        %v358 = vstv %s357
        %v359 = vmul.f32 %v358, %v319
        %v361 = vrot.slane %v359, 2
        %v363 = vadd.f32 %v355, %v361
        %s364 = sadd.s32 %s320, 7
        %s365 = sld [smem:[#allocation2 + %s364]]
        %v366 = vstv %s365
        %v367 = vadd.f32 %v363, %v366
        %s368 = sadd.s32 %s320, 8
        %s369 = sld [smem:[#allocation2 + %s368]]
        %v370 = vstv %s369
        %v371 = vmul.f32 %v370, %v317
        %s372 = sadd.s32 %s320, 9
        %s373 = sld [smem:[#allocation2 + %s372]]
        %v374 = vstv %s373
        %v375 = vmul.f32 %v374, %v317
        %v377 = vrot.slane %v375, 1
        %v379 = vadd.f32 %v371, %v377
        %s380 = sadd.s32 %s320, 10
        %s381 = sld [smem:[#allocation2 + %s380]]
        %v382 = vstv %s381
        %v383 = vmul.f32 %v382, %v319
        %v385 = vrot.slane %v383, 2
        %v387 = vadd.f32 %v379, %v385
        %s388 = sadd.s32 %s320, 11
        %s389 = sld [smem:[#allocation2 + %s388]]
        %v390 = vstv %s389
        %v391 = vadd.f32 %v387, %v390
        %v392 = vmax.f32 %v391, 0.05
        %vm393 = vcmp.ge.f32.partialorder %v343, 0.0
        %v394 = vmul.f32 %v392, 32.0
        %vm395 = vcmp.lt.f32.partialorder %v343, %v394
        %vm396 = vmand %vm393, %vm395
        %vm397 = vcmp.ge.f32.partialorder %v367, 0.0
        %vm398 = vmand %vm396, %vm397
        %v399 = vmul.f32 %v392, 16.0
        %vm400 = vcmp.lt.f32.partialorder %v367, %v399
        %vm401 = vmand %vm398, %vm400
        %v402 = vsel %vm401, 1, 0
        %v403 = vcvt.s32.f32 %v402
        %v404 = vrcp.pop %v392
        %v405 = vmul.f32 %v392, %v404
        %v406 = vsub.f32 2.0, %v405
        %v407 = vmul.f32 %v404, %v406
        %v408 = vmul.f32 %v343, %v407
        %v409 = vmul.f32 %v367, %v407
        %v410 = vfloor.f32 %v408
        %v411 = vfloor.f32 %v409
        %v412 = vsub.f32 %v408, %v410
        %v413 = vsub.f32 %v409, %v411
        %v414 = vcvt.f32.s32.to.zero.pseudo %v410
        %v415 = vcvt.f32.s32.to.zero.pseudo %v411
        %vm416 = vcmp.ge.s32.totalorder %v414, 0
        %vm417 = vcmp.lt.s32.totalorder %v414, 32
        %vm418 = vmand %vm416, %vm417
        %v419 = vsel %vm418, 1, 0
        %v420 = vcvt.s32.f32 %v419
        %vm421 = vcmp.ge.s32.totalorder %v414, 4294967295
        %vm422 = vcmp.lt.s32.totalorder %v414, 31
        %vm423 = vmand %vm421, %vm422
        %v424 = vsel %vm423, 1, 0
        %v425 = vcvt.s32.f32 %v424
        %vm426 = vcmp.ge.s32.totalorder %v415, 0
        %vm427 = vcmp.lt.s32.totalorder %v415, 16
        %vm428 = vmand %vm426, %vm427
        %v429 = vsel %vm428, 1, 0
        %v430 = vcvt.s32.f32 %v429
        %vm431 = vcmp.ge.s32.totalorder %v415, 4294967295
        %vm432 = vcmp.lt.s32.totalorder %v415, 15
        %vm433 = vmand %vm431, %vm432
        %v434 = vsel %vm433, 1, 0
        %v435 = vcvt.s32.f32 %v434
        %v436 = vsub.f32 1.0, %v412
        %v437 = vsub.f32 1.0, %v413
        %v438 = vmul.f32 %v436, %v437
        %v439 = vmul.f32 %v420, %v430
        %v440 = vmul.f32 %v438, %v439
        %v441 = vmul.f32 %v412, %v437
        %v442 = vmul.f32 %v425, %v430
        %v443 = vmul.f32 %v441, %v442
        %v444 = vmul.f32 %v436, %v413
        %v445 = vmul.f32 %v420, %v435
        %v446 = vmul.f32 %v444, %v445
        %v447 = vmul.f32 %v412, %v413
        %v448 = vmul.f32 %v425, %v435
        %v449 = vmul.f32 %v447, %v448
        %v450 = vlaneseq
        %v451 = vshrl.u32 %v450, 7
        %v452 = vadd.s32 %v451, 8
        %v453 = vadd.s32 %v451, 16
        %v454 = vadd.s32 %v451, 24
        %v455 = vadd.s32 %v451, 32
        %v456 = vadd.s32 %v451, 40
        %v457 = vadd.s32 %v451, 48
        %v458 = vadd.s32 %v451, 56
        %v459 = vadd.s32 %v451, 64
        %v460 = vadd.s32 %v451, 72
        %v461 = vadd.s32 %v451, 80
        %v462 = vadd.s32 %v451, 88
        %v463 = vadd.s32 %v451, 96
        %v464 = vadd.s32 %v451, 104
        %v465 = vadd.s32 %v451, 112
        %v466 = vadd.s32 %v451, 120
        %v467 = vadd.s32 %v451, 128
        %v468 = vadd.s32 %v451, 136
        %v469 = vadd.s32 %v451, 144
        %v470 = vadd.s32 %v451, 152
        %v471 = vadd.s32 %v451, 160
        %v472 = vadd.s32 %v451, 168
        %v473 = vadd.s32 %v451, 176
        %v474 = vadd.s32 %v451, 184
        %v475 = vadd.s32 %v451, 192
        %v476 = vadd.s32 %v451, 200
        %v477 = vadd.s32 %v451, 208
        %v478 = vadd.s32 %v451, 216
        %v479 = vadd.s32 %v451, 224
        %v480 = vadd.s32 %v451, 232
        %v481 = vadd.s32 %v451, 240
        %v482 = vadd.s32 %v451, 248
        %v483 = vadd.s32 %v451, 256
        %v484 = vadd.s32 %v451, 264
        %v485 = vadd.s32 %v451, 272
        %v486 = vadd.s32 %v451, 280
        %v487 = vadd.s32 %v451, 288
        %v488 = vadd.s32 %v451, 296
        %v489 = vadd.s32 %v451, 304
        %v490 = vadd.s32 %v451, 312
        %v491 = vadd.s32 %v451, 320
        %v492 = vadd.s32 %v451, 328
        %v493 = vadd.s32 %v451, 336
        %v494 = vadd.s32 %v451, 344
        %v495 = vadd.s32 %v451, 352
        %v496 = vadd.s32 %v451, 360
        %v497 = vadd.s32 %v451, 368
        %v498 = vadd.s32 %v451, 376
        %v499 = vadd.s32 %v451, 384
        %v500 = vadd.s32 %v451, 392
        %v501 = vadd.s32 %v451, 400
        %v502 = vadd.s32 %v451, 408
        %v503 = vadd.s32 %v451, 416
        %v504 = vadd.s32 %v451, 424
        %v505 = vadd.s32 %v451, 432
        %v506 = vadd.s32 %v451, 440
        %v507 = vadd.s32 %v451, 448
        %v508 = vadd.s32 %v451, 456
        %v509 = vadd.s32 %v451, 464
        %v510 = vadd.s32 %v451, 472
        %v511 = vadd.s32 %v451, 480
        %v512 = vadd.s32 %v451, 488
        %v513 = vadd.s32 %v451, 496
        %v514 = vadd.s32 %v451, 504
        %v515 = vmul.u32 %v415, 32
        %v516 = vadd.s32 %v515, %v414
        %v517 = vlaneseq
        %v518 = vshrl.u32 %v517, 7
        %v519 = vsub.s32 0, %v518
        %v520 = vrot.slane %v516, %v519
        %v521 = vsub.s32 %v451, %v520
        %v522 = vsub.s32 %v452, %v520
        %v523 = vsub.s32 %v453, %v520
        %v524 = vsub.s32 %v454, %v520
        %v525 = vsub.s32 %v455, %v520
        %v526 = vsub.s32 %v456, %v520
        %v527 = vsub.s32 %v457, %v520
        %v528 = vsub.s32 %v458, %v520
        %v529 = vsub.s32 %v459, %v520
        %v530 = vsub.s32 %v460, %v520
        %v531 = vsub.s32 %v461, %v520
        %v532 = vsub.s32 %v462, %v520
        %v533 = vsub.s32 %v463, %v520
        %v534 = vsub.s32 %v464, %v520
        %v535 = vsub.s32 %v465, %v520
        %v536 = vsub.s32 %v466, %v520
        %v537 = vsub.s32 %v467, %v520
        %v538 = vsub.s32 %v468, %v520
        %v539 = vsub.s32 %v469, %v520
        %v540 = vsub.s32 %v470, %v520
        %v541 = vsub.s32 %v471, %v520
        %v542 = vsub.s32 %v472, %v520
        %v543 = vsub.s32 %v473, %v520
        %v544 = vsub.s32 %v474, %v520
        %v545 = vsub.s32 %v475, %v520
        %v546 = vsub.s32 %v476, %v520
        %v547 = vsub.s32 %v477, %v520
        %v548 = vsub.s32 %v478, %v520
        %v549 = vsub.s32 %v479, %v520
        %v550 = vsub.s32 %v480, %v520
        %v551 = vsub.s32 %v481, %v520
        %v552 = vsub.s32 %v482, %v520
        %v553 = vsub.s32 %v483, %v520
        %v554 = vsub.s32 %v484, %v520
        %v555 = vsub.s32 %v485, %v520
        %v556 = vsub.s32 %v486, %v520
        %v557 = vsub.s32 %v487, %v520
        %v558 = vsub.s32 %v488, %v520
        %v559 = vsub.s32 %v489, %v520
        %v560 = vsub.s32 %v490, %v520
        %v561 = vsub.s32 %v491, %v520
        %v562 = vsub.s32 %v492, %v520
        %v563 = vsub.s32 %v493, %v520
        %v564 = vsub.s32 %v494, %v520
        %v565 = vsub.s32 %v495, %v520
        %v566 = vsub.s32 %v496, %v520
        %v567 = vsub.s32 %v497, %v520
        %v568 = vsub.s32 %v498, %v520
        %v569 = vsub.s32 %v499, %v520
        %v570 = vsub.s32 %v500, %v520
        %v571 = vsub.s32 %v501, %v520
        %v572 = vsub.s32 %v502, %v520
        %v573 = vsub.s32 %v503, %v520
        %v574 = vsub.s32 %v504, %v520
        %v575 = vsub.s32 %v505, %v520
        %v576 = vsub.s32 %v506, %v520
        %v577 = vsub.s32 %v507, %v520
        %v578 = vsub.s32 %v508, %v520
        %v579 = vsub.s32 %v509, %v520
        %v580 = vsub.s32 %v510, %v520
        %v581 = vsub.s32 %v511, %v520
        %v582 = vsub.s32 %v512, %v520
        %v583 = vsub.s32 %v513, %v520
        %v584 = vsub.s32 %v514, %v520
        %vm585 = vcmp.eq.s32.totalorder %v521, 0
        %vm586 = vcmp.eq.s32.totalorder %v522, 0
        %vm587 = vcmp.eq.s32.totalorder %v523, 0
        %vm588 = vcmp.eq.s32.totalorder %v524, 0
        %vm589 = vcmp.eq.s32.totalorder %v525, 0
        %vm590 = vcmp.eq.s32.totalorder %v526, 0
        %vm591 = vcmp.eq.s32.totalorder %v527, 0
        %vm592 = vcmp.eq.s32.totalorder %v528, 0
        %vm593 = vcmp.eq.s32.totalorder %v529, 0
        %vm594 = vcmp.eq.s32.totalorder %v530, 0
        %vm595 = vcmp.eq.s32.totalorder %v531, 0
        %vm596 = vcmp.eq.s32.totalorder %v532, 0
        %vm597 = vcmp.eq.s32.totalorder %v533, 0
        %vm598 = vcmp.eq.s32.totalorder %v534, 0
        %vm599 = vcmp.eq.s32.totalorder %v535, 0
        %vm600 = vcmp.eq.s32.totalorder %v536, 0
        %vm601 = vcmp.eq.s32.totalorder %v537, 0
        %vm602 = vcmp.eq.s32.totalorder %v538, 0
        %vm603 = vcmp.eq.s32.totalorder %v539, 0
        %vm604 = vcmp.eq.s32.totalorder %v540, 0
        %vm605 = vcmp.eq.s32.totalorder %v541, 0
        %vm606 = vcmp.eq.s32.totalorder %v542, 0
        %vm607 = vcmp.eq.s32.totalorder %v543, 0
        %vm608 = vcmp.eq.s32.totalorder %v544, 0
        %vm609 = vcmp.eq.s32.totalorder %v545, 0
        %vm610 = vcmp.eq.s32.totalorder %v546, 0
        %vm611 = vcmp.eq.s32.totalorder %v547, 0
        %vm612 = vcmp.eq.s32.totalorder %v548, 0
        %vm613 = vcmp.eq.s32.totalorder %v549, 0
        %vm614 = vcmp.eq.s32.totalorder %v550, 0
        %vm615 = vcmp.eq.s32.totalorder %v551, 0
        %vm616 = vcmp.eq.s32.totalorder %v552, 0
        %vm617 = vcmp.eq.s32.totalorder %v553, 0
        %vm618 = vcmp.eq.s32.totalorder %v554, 0
        %vm619 = vcmp.eq.s32.totalorder %v555, 0
        %vm620 = vcmp.eq.s32.totalorder %v556, 0
        %vm621 = vcmp.eq.s32.totalorder %v557, 0
        %vm622 = vcmp.eq.s32.totalorder %v558, 0
        %vm623 = vcmp.eq.s32.totalorder %v559, 0
        %vm624 = vcmp.eq.s32.totalorder %v560, 0
        %vm625 = vcmp.eq.s32.totalorder %v561, 0
        %vm626 = vcmp.eq.s32.totalorder %v562, 0
        %vm627 = vcmp.eq.s32.totalorder %v563, 0
        %vm628 = vcmp.eq.s32.totalorder %v564, 0
        %vm629 = vcmp.eq.s32.totalorder %v565, 0
        %vm630 = vcmp.eq.s32.totalorder %v566, 0
        %vm631 = vcmp.eq.s32.totalorder %v567, 0
        %vm632 = vcmp.eq.s32.totalorder %v568, 0
        %vm633 = vcmp.eq.s32.totalorder %v569, 0
        %vm634 = vcmp.eq.s32.totalorder %v570, 0
        %vm635 = vcmp.eq.s32.totalorder %v571, 0
        %vm636 = vcmp.eq.s32.totalorder %v572, 0
        %vm637 = vcmp.eq.s32.totalorder %v573, 0
        %vm638 = vcmp.eq.s32.totalorder %v574, 0
        %vm639 = vcmp.eq.s32.totalorder %v575, 0
        %vm640 = vcmp.eq.s32.totalorder %v576, 0
        %vm641 = vcmp.eq.s32.totalorder %v577, 0
        %vm642 = vcmp.eq.s32.totalorder %v578, 0
        %vm643 = vcmp.eq.s32.totalorder %v579, 0
        %vm644 = vcmp.eq.s32.totalorder %v580, 0
        %vm645 = vcmp.eq.s32.totalorder %v581, 0
        %vm646 = vcmp.eq.s32.totalorder %v582, 0
        %vm647 = vcmp.eq.s32.totalorder %v583, 0
        %vm648 = vcmp.eq.s32.totalorder %v584, 0
        %vm649 = vcmp.eq.s32.totalorder %v521, 1
        %vm650 = vcmp.eq.s32.totalorder %v522, 1
        %vm651 = vcmp.eq.s32.totalorder %v523, 1
        %vm652 = vcmp.eq.s32.totalorder %v524, 1
        %vm653 = vcmp.eq.s32.totalorder %v525, 1
        %vm654 = vcmp.eq.s32.totalorder %v526, 1
        %vm655 = vcmp.eq.s32.totalorder %v527, 1
        %vm656 = vcmp.eq.s32.totalorder %v528, 1
        %vm657 = vcmp.eq.s32.totalorder %v529, 1
        %vm658 = vcmp.eq.s32.totalorder %v530, 1
        %vm659 = vcmp.eq.s32.totalorder %v531, 1
        %vm660 = vcmp.eq.s32.totalorder %v532, 1
        %vm661 = vcmp.eq.s32.totalorder %v533, 1
        %vm662 = vcmp.eq.s32.totalorder %v534, 1
        %vm663 = vcmp.eq.s32.totalorder %v535, 1
        %vm664 = vcmp.eq.s32.totalorder %v536, 1
        %vm665 = vcmp.eq.s32.totalorder %v537, 1
        %vm666 = vcmp.eq.s32.totalorder %v538, 1
        %vm667 = vcmp.eq.s32.totalorder %v539, 1
        %vm668 = vcmp.eq.s32.totalorder %v540, 1
        %vm669 = vcmp.eq.s32.totalorder %v541, 1
        %vm670 = vcmp.eq.s32.totalorder %v542, 1
        %vm671 = vcmp.eq.s32.totalorder %v543, 1
        %vm672 = vcmp.eq.s32.totalorder %v544, 1
        %vm673 = vcmp.eq.s32.totalorder %v545, 1
        %vm674 = vcmp.eq.s32.totalorder %v546, 1
        %vm675 = vcmp.eq.s32.totalorder %v547, 1
        %vm676 = vcmp.eq.s32.totalorder %v548, 1
        %vm677 = vcmp.eq.s32.totalorder %v549, 1
        %vm678 = vcmp.eq.s32.totalorder %v550, 1
        %vm679 = vcmp.eq.s32.totalorder %v551, 1
        %vm680 = vcmp.eq.s32.totalorder %v552, 1
        %vm681 = vcmp.eq.s32.totalorder %v553, 1
        %vm682 = vcmp.eq.s32.totalorder %v554, 1
        %vm683 = vcmp.eq.s32.totalorder %v555, 1
        %vm684 = vcmp.eq.s32.totalorder %v556, 1
        %vm685 = vcmp.eq.s32.totalorder %v557, 1
        %vm686 = vcmp.eq.s32.totalorder %v558, 1
        %vm687 = vcmp.eq.s32.totalorder %v559, 1
        %vm688 = vcmp.eq.s32.totalorder %v560, 1
        %vm689 = vcmp.eq.s32.totalorder %v561, 1
        %vm690 = vcmp.eq.s32.totalorder %v562, 1
        %vm691 = vcmp.eq.s32.totalorder %v563, 1
        %vm692 = vcmp.eq.s32.totalorder %v564, 1
        %vm693 = vcmp.eq.s32.totalorder %v565, 1
        %vm694 = vcmp.eq.s32.totalorder %v566, 1
        %vm695 = vcmp.eq.s32.totalorder %v567, 1
        %vm696 = vcmp.eq.s32.totalorder %v568, 1
        %vm697 = vcmp.eq.s32.totalorder %v569, 1
        %vm698 = vcmp.eq.s32.totalorder %v570, 1
        %vm699 = vcmp.eq.s32.totalorder %v571, 1
        %vm700 = vcmp.eq.s32.totalorder %v572, 1
        %vm701 = vcmp.eq.s32.totalorder %v573, 1
        %vm702 = vcmp.eq.s32.totalorder %v574, 1
        %vm703 = vcmp.eq.s32.totalorder %v575, 1
        %vm704 = vcmp.eq.s32.totalorder %v576, 1
        %vm705 = vcmp.eq.s32.totalorder %v577, 1
        %vm706 = vcmp.eq.s32.totalorder %v578, 1
        %vm707 = vcmp.eq.s32.totalorder %v579, 1
        %vm708 = vcmp.eq.s32.totalorder %v580, 1
        %vm709 = vcmp.eq.s32.totalorder %v581, 1
        %vm710 = vcmp.eq.s32.totalorder %v582, 1
        %vm711 = vcmp.eq.s32.totalorder %v583, 1
        %vm712 = vcmp.eq.s32.totalorder %v584, 1
        %vm713 = vcmp.eq.s32.totalorder %v521, 32
        %vm714 = vcmp.eq.s32.totalorder %v522, 32
        %vm715 = vcmp.eq.s32.totalorder %v523, 32
        %vm716 = vcmp.eq.s32.totalorder %v524, 32
        %vm717 = vcmp.eq.s32.totalorder %v525, 32
        %vm718 = vcmp.eq.s32.totalorder %v526, 32
        %vm719 = vcmp.eq.s32.totalorder %v527, 32
        %vm720 = vcmp.eq.s32.totalorder %v528, 32
        %vm721 = vcmp.eq.s32.totalorder %v529, 32
        %vm722 = vcmp.eq.s32.totalorder %v530, 32
        %vm723 = vcmp.eq.s32.totalorder %v531, 32
        %vm724 = vcmp.eq.s32.totalorder %v532, 32
        %vm725 = vcmp.eq.s32.totalorder %v533, 32
        %vm726 = vcmp.eq.s32.totalorder %v534, 32
        %vm727 = vcmp.eq.s32.totalorder %v535, 32
        %vm728 = vcmp.eq.s32.totalorder %v536, 32
        %vm729 = vcmp.eq.s32.totalorder %v537, 32
        %vm730 = vcmp.eq.s32.totalorder %v538, 32
        %vm731 = vcmp.eq.s32.totalorder %v539, 32
        %vm732 = vcmp.eq.s32.totalorder %v540, 32
        %vm733 = vcmp.eq.s32.totalorder %v541, 32
        %vm734 = vcmp.eq.s32.totalorder %v542, 32
        %vm735 = vcmp.eq.s32.totalorder %v543, 32
        %vm736 = vcmp.eq.s32.totalorder %v544, 32
        %vm737 = vcmp.eq.s32.totalorder %v545, 32
        %vm738 = vcmp.eq.s32.totalorder %v546, 32
        %vm739 = vcmp.eq.s32.totalorder %v547, 32
        %vm740 = vcmp.eq.s32.totalorder %v548, 32
        %vm741 = vcmp.eq.s32.totalorder %v549, 32
        %vm742 = vcmp.eq.s32.totalorder %v550, 32
        %vm743 = vcmp.eq.s32.totalorder %v551, 32
        %vm744 = vcmp.eq.s32.totalorder %v552, 32
        %vm745 = vcmp.eq.s32.totalorder %v553, 32
        %vm746 = vcmp.eq.s32.totalorder %v554, 32
        %vm747 = vcmp.eq.s32.totalorder %v555, 32
        %vm748 = vcmp.eq.s32.totalorder %v556, 32
        %vm749 = vcmp.eq.s32.totalorder %v557, 32
        %vm750 = vcmp.eq.s32.totalorder %v558, 32
        %vm751 = vcmp.eq.s32.totalorder %v559, 32
        %vm752 = vcmp.eq.s32.totalorder %v560, 32
        %vm753 = vcmp.eq.s32.totalorder %v561, 32
        %vm754 = vcmp.eq.s32.totalorder %v562, 32
        %vm755 = vcmp.eq.s32.totalorder %v563, 32
        %vm756 = vcmp.eq.s32.totalorder %v564, 32
        %vm757 = vcmp.eq.s32.totalorder %v565, 32
        %vm758 = vcmp.eq.s32.totalorder %v566, 32
        %vm759 = vcmp.eq.s32.totalorder %v567, 32
        %vm760 = vcmp.eq.s32.totalorder %v568, 32
        %vm761 = vcmp.eq.s32.totalorder %v569, 32
        %vm762 = vcmp.eq.s32.totalorder %v570, 32
        %vm763 = vcmp.eq.s32.totalorder %v571, 32
        %vm764 = vcmp.eq.s32.totalorder %v572, 32
        %vm765 = vcmp.eq.s32.totalorder %v573, 32
        %vm766 = vcmp.eq.s32.totalorder %v574, 32
        %vm767 = vcmp.eq.s32.totalorder %v575, 32
        %vm768 = vcmp.eq.s32.totalorder %v576, 32
        %vm769 = vcmp.eq.s32.totalorder %v577, 32
        %vm770 = vcmp.eq.s32.totalorder %v578, 32
        %vm771 = vcmp.eq.s32.totalorder %v579, 32
        %vm772 = vcmp.eq.s32.totalorder %v580, 32
        %vm773 = vcmp.eq.s32.totalorder %v581, 32
        %vm774 = vcmp.eq.s32.totalorder %v582, 32
        %vm775 = vcmp.eq.s32.totalorder %v583, 32
        %vm776 = vcmp.eq.s32.totalorder %v584, 32
        %vm777 = vcmp.eq.s32.totalorder %v521, 33
        %vm778 = vcmp.eq.s32.totalorder %v522, 33
        %vm779 = vcmp.eq.s32.totalorder %v523, 33
        %vm780 = vcmp.eq.s32.totalorder %v524, 33
        %vm781 = vcmp.eq.s32.totalorder %v525, 33
        %vm782 = vcmp.eq.s32.totalorder %v526, 33
        %vm783 = vcmp.eq.s32.totalorder %v527, 33
        %vm784 = vcmp.eq.s32.totalorder %v528, 33
        %vm785 = vcmp.eq.s32.totalorder %v529, 33
        %vm786 = vcmp.eq.s32.totalorder %v530, 33
        %vm787 = vcmp.eq.s32.totalorder %v531, 33
        %vm788 = vcmp.eq.s32.totalorder %v532, 33
        %vm789 = vcmp.eq.s32.totalorder %v533, 33
        %vm790 = vcmp.eq.s32.totalorder %v534, 33
        %vm791 = vcmp.eq.s32.totalorder %v535, 33
        %vm792 = vcmp.eq.s32.totalorder %v536, 33
        %vm793 = vcmp.eq.s32.totalorder %v537, 33
        %vm794 = vcmp.eq.s32.totalorder %v538, 33
        %vm795 = vcmp.eq.s32.totalorder %v539, 33
        %vm796 = vcmp.eq.s32.totalorder %v540, 33
        %vm797 = vcmp.eq.s32.totalorder %v541, 33
        %vm798 = vcmp.eq.s32.totalorder %v542, 33
        %vm799 = vcmp.eq.s32.totalorder %v543, 33
        %vm800 = vcmp.eq.s32.totalorder %v544, 33
        %vm801 = vcmp.eq.s32.totalorder %v545, 33
        %vm802 = vcmp.eq.s32.totalorder %v546, 33
        %vm803 = vcmp.eq.s32.totalorder %v547, 33
        %vm804 = vcmp.eq.s32.totalorder %v548, 33
        %vm805 = vcmp.eq.s32.totalorder %v549, 33
        %vm806 = vcmp.eq.s32.totalorder %v550, 33
        %vm807 = vcmp.eq.s32.totalorder %v551, 33
        %vm808 = vcmp.eq.s32.totalorder %v552, 33
        %vm809 = vcmp.eq.s32.totalorder %v553, 33
        %vm810 = vcmp.eq.s32.totalorder %v554, 33
        %vm811 = vcmp.eq.s32.totalorder %v555, 33
        %vm812 = vcmp.eq.s32.totalorder %v556, 33
        %vm813 = vcmp.eq.s32.totalorder %v557, 33
        %vm814 = vcmp.eq.s32.totalorder %v558, 33
        %vm815 = vcmp.eq.s32.totalorder %v559, 33
        %vm816 = vcmp.eq.s32.totalorder %v560, 33
        %vm817 = vcmp.eq.s32.totalorder %v561, 33
        %vm818 = vcmp.eq.s32.totalorder %v562, 33
        %vm819 = vcmp.eq.s32.totalorder %v563, 33
        %vm820 = vcmp.eq.s32.totalorder %v564, 33
        %vm821 = vcmp.eq.s32.totalorder %v565, 33
        %vm822 = vcmp.eq.s32.totalorder %v566, 33
        %vm823 = vcmp.eq.s32.totalorder %v567, 33
        %vm824 = vcmp.eq.s32.totalorder %v568, 33
        %vm825 = vcmp.eq.s32.totalorder %v569, 33
        %vm826 = vcmp.eq.s32.totalorder %v570, 33
        %vm827 = vcmp.eq.s32.totalorder %v571, 33
        %vm828 = vcmp.eq.s32.totalorder %v572, 33
        %vm829 = vcmp.eq.s32.totalorder %v573, 33
        %vm830 = vcmp.eq.s32.totalorder %v574, 33
        %vm831 = vcmp.eq.s32.totalorder %v575, 33
        %vm832 = vcmp.eq.s32.totalorder %v576, 33
        %vm833 = vcmp.eq.s32.totalorder %v577, 33
        %vm834 = vcmp.eq.s32.totalorder %v578, 33
        %vm835 = vcmp.eq.s32.totalorder %v579, 33
        %vm836 = vcmp.eq.s32.totalorder %v580, 33
        %vm837 = vcmp.eq.s32.totalorder %v581, 33
        %vm838 = vcmp.eq.s32.totalorder %v582, 33
        %vm839 = vcmp.eq.s32.totalorder %v583, 33
        %vm840 = vcmp.eq.s32.totalorder %v584, 33
        %v841 = vlaneseq
        %v842 = vshrl.u32 %v841, 7
        %v843 = vsub.s32 0, %v842
        %v844 = vrot.slane %v449, %v843
        %v845 = vsel %vm777, %v844, 0.0
        %v846 = vsel %vm778, %v844, 0.0
        %v847 = vsel %vm779, %v844, 0.0
        %v848 = vsel %vm780, %v844, 0.0
        %v849 = vsel %vm781, %v844, 0.0
        %v850 = vsel %vm782, %v844, 0.0
        %v851 = vsel %vm783, %v844, 0.0
        %v852 = vsel %vm784, %v844, 0.0
        %v853 = vsel %vm785, %v844, 0.0
        %v854 = vsel %vm786, %v844, 0.0
        %v855 = vsel %vm787, %v844, 0.0
        %v856 = vsel %vm788, %v844, 0.0
        %v857 = vsel %vm789, %v844, 0.0
        %v858 = vsel %vm790, %v844, 0.0
        %v859 = vsel %vm791, %v844, 0.0
        %v860 = vsel %vm792, %v844, 0.0
        %v861 = vsel %vm793, %v844, 0.0
        %v862 = vsel %vm794, %v844, 0.0
        %v863 = vsel %vm795, %v844, 0.0
        %v864 = vsel %vm796, %v844, 0.0
        %v865 = vsel %vm797, %v844, 0.0
        %v866 = vsel %vm798, %v844, 0.0
        %v867 = vsel %vm799, %v844, 0.0
        %v868 = vsel %vm800, %v844, 0.0
        %v869 = vsel %vm801, %v844, 0.0
        %v870 = vsel %vm802, %v844, 0.0
        %v871 = vsel %vm803, %v844, 0.0
        %v872 = vsel %vm804, %v844, 0.0
        %v873 = vsel %vm805, %v844, 0.0
        %v874 = vsel %vm806, %v844, 0.0
        %v875 = vsel %vm807, %v844, 0.0
        %v876 = vsel %vm808, %v844, 0.0
        %v877 = vsel %vm809, %v844, 0.0
        %v878 = vsel %vm810, %v844, 0.0
        %v879 = vsel %vm811, %v844, 0.0
        %v880 = vsel %vm812, %v844, 0.0
        %v881 = vsel %vm813, %v844, 0.0
        %v882 = vsel %vm814, %v844, 0.0
        %v883 = vsel %vm815, %v844, 0.0
        %v884 = vsel %vm816, %v844, 0.0
        %v885 = vsel %vm817, %v844, 0.0
        %v886 = vsel %vm818, %v844, 0.0
        %v887 = vsel %vm819, %v844, 0.0
        %v888 = vsel %vm820, %v844, 0.0
        %v889 = vsel %vm821, %v844, 0.0
        %v890 = vsel %vm822, %v844, 0.0
        %v891 = vsel %vm823, %v844, 0.0
        %v892 = vsel %vm824, %v844, 0.0
        %v893 = vsel %vm825, %v844, 0.0
        %v894 = vsel %vm826, %v844, 0.0
        %v895 = vsel %vm827, %v844, 0.0
        %v896 = vsel %vm828, %v844, 0.0
        %v897 = vsel %vm829, %v844, 0.0
        %v898 = vsel %vm830, %v844, 0.0
        %v899 = vsel %vm831, %v844, 0.0
        %v900 = vsel %vm832, %v844, 0.0
        %v901 = vsel %vm833, %v844, 0.0
        %v902 = vsel %vm834, %v844, 0.0
        %v903 = vsel %vm835, %v844, 0.0
        %v904 = vsel %vm836, %v844, 0.0
        %v905 = vsel %vm837, %v844, 0.0
        %v906 = vsel %vm838, %v844, 0.0
        %v907 = vsel %vm839, %v844, 0.0
        %v908 = vsel %vm840, %v844, 0.0
        %v909 = vlaneseq
        %v910 = vshrl.u32 %v909, 7
        %v911 = vsub.s32 0, %v910
        %v912 = vrot.slane %v446, %v911
        %v913 = vsel %vm713, %v912, %v845
        %v914 = vsel %vm714, %v912, %v846
        %v915 = vsel %vm715, %v912, %v847
        %v916 = vsel %vm716, %v912, %v848
        %v917 = vsel %vm717, %v912, %v849
        %v918 = vsel %vm718, %v912, %v850
        %v919 = vsel %vm719, %v912, %v851
        %v920 = vsel %vm720, %v912, %v852
        %v921 = vsel %vm721, %v912, %v853
        %v922 = vsel %vm722, %v912, %v854
        %v923 = vsel %vm723, %v912, %v855
        %v924 = vsel %vm724, %v912, %v856
        %v925 = vsel %vm725, %v912, %v857
        %v926 = vsel %vm726, %v912, %v858
        %v927 = vsel %vm727, %v912, %v859
        %v928 = vsel %vm728, %v912, %v860
        %v929 = vsel %vm729, %v912, %v861
        %v930 = vsel %vm730, %v912, %v862
        %v931 = vsel %vm731, %v912, %v863
        %v932 = vsel %vm732, %v912, %v864
        %v933 = vsel %vm733, %v912, %v865
        %v934 = vsel %vm734, %v912, %v866
        %v935 = vsel %vm735, %v912, %v867
        %v936 = vsel %vm736, %v912, %v868
        %v937 = vsel %vm737, %v912, %v869
        %v938 = vsel %vm738, %v912, %v870
        %v939 = vsel %vm739, %v912, %v871
        %v940 = vsel %vm740, %v912, %v872
        %v941 = vsel %vm741, %v912, %v873
        %v942 = vsel %vm742, %v912, %v874
        %v943 = vsel %vm743, %v912, %v875
        %v944 = vsel %vm744, %v912, %v876
        %v945 = vsel %vm745, %v912, %v877
        %v946 = vsel %vm746, %v912, %v878
        %v947 = vsel %vm747, %v912, %v879
        %v948 = vsel %vm748, %v912, %v880
        %v949 = vsel %vm749, %v912, %v881
        %v950 = vsel %vm750, %v912, %v882
        %v951 = vsel %vm751, %v912, %v883
        %v952 = vsel %vm752, %v912, %v884
        %v953 = vsel %vm753, %v912, %v885
        %v954 = vsel %vm754, %v912, %v886
        %v955 = vsel %vm755, %v912, %v887
        %v956 = vsel %vm756, %v912, %v888
        %v957 = vsel %vm757, %v912, %v889
        %v958 = vsel %vm758, %v912, %v890
        %v959 = vsel %vm759, %v912, %v891
        %v960 = vsel %vm760, %v912, %v892
        %v961 = vsel %vm761, %v912, %v893
        %v962 = vsel %vm762, %v912, %v894
        %v963 = vsel %vm763, %v912, %v895
        %v964 = vsel %vm764, %v912, %v896
        %v965 = vsel %vm765, %v912, %v897
        %v966 = vsel %vm766, %v912, %v898
        %v967 = vsel %vm767, %v912, %v899
        %v968 = vsel %vm768, %v912, %v900
        %v969 = vsel %vm769, %v912, %v901
        %v970 = vsel %vm770, %v912, %v902
        %v971 = vsel %vm771, %v912, %v903
        %v972 = vsel %vm772, %v912, %v904
        %v973 = vsel %vm773, %v912, %v905
        %v974 = vsel %vm774, %v912, %v906
        %v975 = vsel %vm775, %v912, %v907
        %v976 = vsel %vm776, %v912, %v908
        %v977 = vlaneseq
        %v978 = vshrl.u32 %v977, 7
        %v979 = vsub.s32 0, %v978
        %v980 = vrot.slane %v443, %v979
        %v981 = vsel %vm649, %v980, %v913
        %v982 = vsel %vm650, %v980, %v914
        %v983 = vsel %vm651, %v980, %v915
        %v984 = vsel %vm652, %v980, %v916
        %v985 = vsel %vm653, %v980, %v917
        %v986 = vsel %vm654, %v980, %v918
        %v987 = vsel %vm655, %v980, %v919
        %v988 = vsel %vm656, %v980, %v920
        %v989 = vsel %vm657, %v980, %v921
        %v990 = vsel %vm658, %v980, %v922
        %v991 = vsel %vm659, %v980, %v923
        %v992 = vsel %vm660, %v980, %v924
        %v993 = vsel %vm661, %v980, %v925
        %v994 = vsel %vm662, %v980, %v926
        %v995 = vsel %vm663, %v980, %v927
        %v996 = vsel %vm664, %v980, %v928
        %v997 = vsel %vm665, %v980, %v929
        %v998 = vsel %vm666, %v980, %v930
        %v999 = vsel %vm667, %v980, %v931
        %v1000 = vsel %vm668, %v980, %v932
        %v1001 = vsel %vm669, %v980, %v933
        %v1002 = vsel %vm670, %v980, %v934
        %v1003 = vsel %vm671, %v980, %v935
        %v1004 = vsel %vm672, %v980, %v936
        %v1005 = vsel %vm673, %v980, %v937
        %v1006 = vsel %vm674, %v980, %v938
        %v1007 = vsel %vm675, %v980, %v939
        %v1008 = vsel %vm676, %v980, %v940
        %v1009 = vsel %vm677, %v980, %v941
        %v1010 = vsel %vm678, %v980, %v942
        %v1011 = vsel %vm679, %v980, %v943
        %v1012 = vsel %vm680, %v980, %v944
        %v1013 = vsel %vm681, %v980, %v945
        %v1014 = vsel %vm682, %v980, %v946
        %v1015 = vsel %vm683, %v980, %v947
        %v1016 = vsel %vm684, %v980, %v948
        %v1017 = vsel %vm685, %v980, %v949
        %v1018 = vsel %vm686, %v980, %v950
        %v1019 = vsel %vm687, %v980, %v951
        %v1020 = vsel %vm688, %v980, %v952
        %v1021 = vsel %vm689, %v980, %v953
        %v1022 = vsel %vm690, %v980, %v954
        %v1023 = vsel %vm691, %v980, %v955
        %v1024 = vsel %vm692, %v980, %v956
        %v1025 = vsel %vm693, %v980, %v957
        %v1026 = vsel %vm694, %v980, %v958
        %v1027 = vsel %vm695, %v980, %v959
        %v1028 = vsel %vm696, %v980, %v960
        %v1029 = vsel %vm697, %v980, %v961
        %v1030 = vsel %vm698, %v980, %v962
        %v1031 = vsel %vm699, %v980, %v963
        %v1032 = vsel %vm700, %v980, %v964
        %v1033 = vsel %vm701, %v980, %v965
        %v1034 = vsel %vm702, %v980, %v966
        %v1035 = vsel %vm703, %v980, %v967
        %v1036 = vsel %vm704, %v980, %v968
        %v1037 = vsel %vm705, %v980, %v969
        %v1038 = vsel %vm706, %v980, %v970
        %v1039 = vsel %vm707, %v980, %v971
        %v1040 = vsel %vm708, %v980, %v972
        %v1041 = vsel %vm709, %v980, %v973
        %v1042 = vsel %vm710, %v980, %v974
        %v1043 = vsel %vm711, %v980, %v975
        %v1044 = vsel %vm712, %v980, %v976
        %v1045 = vlaneseq
        %v1046 = vshrl.u32 %v1045, 7
        %v1047 = vsub.s32 0, %v1046
        %v1048 = vrot.slane %v440, %v1047
        %v1049 = vsel %vm585, %v1048, %v981
        %v1050 = vsel %vm586, %v1048, %v982
        %v1051 = vsel %vm587, %v1048, %v983
        %v1052 = vsel %vm588, %v1048, %v984
        %v1053 = vsel %vm589, %v1048, %v985
        %v1054 = vsel %vm590, %v1048, %v986
        %v1055 = vsel %vm591, %v1048, %v987
        %v1056 = vsel %vm592, %v1048, %v988
        %v1057 = vsel %vm593, %v1048, %v989
        %v1058 = vsel %vm594, %v1048, %v990
        %v1059 = vsel %vm595, %v1048, %v991
        %v1060 = vsel %vm596, %v1048, %v992
        %v1061 = vsel %vm597, %v1048, %v993
        %v1062 = vsel %vm598, %v1048, %v994
        %v1063 = vsel %vm599, %v1048, %v995
        %v1064 = vsel %vm600, %v1048, %v996
        %v1065 = vsel %vm601, %v1048, %v997
        %v1066 = vsel %vm602, %v1048, %v998
        %v1067 = vsel %vm603, %v1048, %v999
        %v1068 = vsel %vm604, %v1048, %v1000
        %v1069 = vsel %vm605, %v1048, %v1001
        %v1070 = vsel %vm606, %v1048, %v1002
        %v1071 = vsel %vm607, %v1048, %v1003
        %v1072 = vsel %vm608, %v1048, %v1004
        %v1073 = vsel %vm609, %v1048, %v1005
        %v1074 = vsel %vm610, %v1048, %v1006
        %v1075 = vsel %vm611, %v1048, %v1007
        %v1076 = vsel %vm612, %v1048, %v1008
        %v1077 = vsel %vm613, %v1048, %v1009
        %v1078 = vsel %vm614, %v1048, %v1010
        %v1079 = vsel %vm615, %v1048, %v1011
        %v1080 = vsel %vm616, %v1048, %v1012
        %v1081 = vsel %vm617, %v1048, %v1013
        %v1082 = vsel %vm618, %v1048, %v1014
        %v1083 = vsel %vm619, %v1048, %v1015
        %v1084 = vsel %vm620, %v1048, %v1016
        %v1085 = vsel %vm621, %v1048, %v1017
        %v1086 = vsel %vm622, %v1048, %v1018
        %v1087 = vsel %vm623, %v1048, %v1019
        %v1088 = vsel %vm624, %v1048, %v1020
        %v1089 = vsel %vm625, %v1048, %v1021
        %v1090 = vsel %vm626, %v1048, %v1022
        %v1091 = vsel %vm627, %v1048, %v1023
        %v1092 = vsel %vm628, %v1048, %v1024
        %v1093 = vsel %vm629, %v1048, %v1025
        %v1094 = vsel %vm630, %v1048, %v1026
        %v1095 = vsel %vm631, %v1048, %v1027
        %v1096 = vsel %vm632, %v1048, %v1028
        %v1097 = vsel %vm633, %v1048, %v1029
        %v1098 = vsel %vm634, %v1048, %v1030
        %v1099 = vsel %vm635, %v1048, %v1031
        %v1100 = vsel %vm636, %v1048, %v1032
        %v1101 = vsel %vm637, %v1048, %v1033
        %v1102 = vsel %vm638, %v1048, %v1034
        %v1103 = vsel %vm639, %v1048, %v1035
        %v1104 = vsel %vm640, %v1048, %v1036
        %v1105 = vsel %vm641, %v1048, %v1037
        %v1106 = vsel %vm642, %v1048, %v1038
        %v1107 = vsel %vm643, %v1048, %v1039
        %v1108 = vsel %vm644, %v1048, %v1040
        %v1109 = vsel %vm645, %v1048, %v1041
        %v1110 = vsel %vm646, %v1048, %v1042
        %v1111 = vsel %vm647, %v1048, %v1043
        %v1112 = vsel %vm648, %v1048, %v1044
        %v1113 = vld [vmem:[%s261] sm:$0xff]
        %v1114 = vld [vmem:[%s261 + $0x8] sm:$0xff]
        %v1115 = vld [vmem:[%s261 + $0x10] sm:$0xff]
        %v1116 = vld [vmem:[%s261 + $0x18] sm:$0xff]
        %v1117 = vld [vmem:[%s261 + $0x20] sm:$0xff]
        %v1118 = vld [vmem:[%s261 + $0x28] sm:$0xff]
        %v1119 = vld [vmem:[%s261 + $0x30] sm:$0xff]
        %v1120 = vld [vmem:[%s261 + $0x38] sm:$0xff]
        %v1121 = vld [vmem:[%s261 + $0x40] sm:$0xff]
        %v1122 = vld [vmem:[%s261 + $0x48] sm:$0xff]
        %v1123 = vld [vmem:[%s261 + $0x50] sm:$0xff]
        %v1124 = vld [vmem:[%s261 + $0x58] sm:$0xff]
        %v1125 = vld [vmem:[%s261 + $0x60] sm:$0xff]
        %v1126 = vld [vmem:[%s261 + $0x68] sm:$0xff]
        %v1127 = vld [vmem:[%s261 + $0x70] sm:$0xff]
        %v1128 = vld [vmem:[%s261 + $0x78] sm:$0xff]
        %v1129 = vpack.c.bf16 %v1117, %v1113
        %v1130 = vpack.c.bf16 %v1118, %v1114
        %v1131 = vpack.c.bf16 %v1119, %v1115
        %v1132 = vpack.c.bf16 %v1120, %v1116
        %v1133 = vpack.c.bf16 %v1125, %v1121
        %v1134 = vpack.c.bf16 %v1126, %v1122
        %v1135 = vpack.c.bf16 %v1127, %v1123
        %v1136 = vpack.c.bf16 %v1128, %v1124
        %v1137 = vpack.c.bf16 %v1050, %v1049
        %v1138 = vpack.c.bf16 %v1052, %v1051
        %v1139 = vpack.c.bf16 %v1054, %v1053
        %v1140 = vpack.c.bf16 %v1056, %v1055
        %v1141 = vpack.c.bf16 %v1058, %v1057
        %v1142 = vpack.c.bf16 %v1060, %v1059
        %v1143 = vpack.c.bf16 %v1062, %v1061
        %v1144 = vpack.c.bf16 %v1064, %v1063
        %v1145 = vpack.c.bf16 %v1066, %v1065
        %v1146 = vpack.c.bf16 %v1068, %v1067
        %v1147 = vpack.c.bf16 %v1070, %v1069
        %v1148 = vpack.c.bf16 %v1072, %v1071
        %v1149 = vpack.c.bf16 %v1074, %v1073
        %v1150 = vpack.c.bf16 %v1076, %v1075
        %v1151 = vpack.c.bf16 %v1078, %v1077
        %v1152 = vpack.c.bf16 %v1080, %v1079
        %v1153 = vpack.c.bf16 %v1082, %v1081
        %v1154 = vpack.c.bf16 %v1084, %v1083
        %v1155 = vpack.c.bf16 %v1086, %v1085
        %v1156 = vpack.c.bf16 %v1088, %v1087
        %v1157 = vpack.c.bf16 %v1090, %v1089
        %v1158 = vpack.c.bf16 %v1092, %v1091
        %v1159 = vpack.c.bf16 %v1094, %v1093
        %v1160 = vpack.c.bf16 %v1096, %v1095
        %v1161 = vpack.c.bf16 %v1098, %v1097
        %v1162 = vpack.c.bf16 %v1100, %v1099
        %v1163 = vpack.c.bf16 %v1102, %v1101
        %v1164 = vpack.c.bf16 %v1104, %v1103
        %v1165 = vpack.c.bf16 %v1106, %v1105
        %v1166 = vpack.c.bf16 %v1108, %v1107
        %v1167 = vpack.c.bf16 %v1110, %v1109
        %v1168 = vpack.c.bf16 %v1112, %v1111
        %1169 = vmatprep.subr.bf16.mxu0 0
        %1170 = vmatpush1.bf16.msra.mxu0 %v1137
        %1171 = vmatprep.subr.bf16.mxu0 0
        %1172 = vmatpush1.bf16.msra.mxu0 %v1138
        %1173 = vmatprep.subr.bf16.mxu0 0
        %1174 = vmatpush1.bf16.msra.mxu0 %v1139
        %1175 = vmatprep.subr.bf16.mxu0 0
        %1176 = vmatpush1.bf16.msra.mxu0 %v1140
        %1177 = vmatprep.subr.bf16.mxu0 0
        %1178 = vmatpush1.bf16.msra.mxu0 %v1141
        %1179 = vmatprep.subr.bf16.mxu0 0
        %1180 = vmatpush1.bf16.msra.mxu0 %v1142
        %1181 = vmatprep.subr.bf16.mxu0 0
        %1182 = vmatpush1.bf16.msra.mxu0 %v1143
        %1183 = vmatprep.subr.bf16.mxu0 0
        %1184 = vmatpush1.bf16.msra.mxu0 %v1144
        %1185 = vmatprep.subr.bf16.mxu0 0
        %1186 = vmatpush1.bf16.msra.mxu0 %v1145
        %1187 = vmatprep.subr.bf16.mxu0 0
        %1188 = vmatpush1.bf16.msra.mxu0 %v1146
        %1189 = vmatprep.subr.bf16.mxu0 0
        %1190 = vmatpush1.bf16.msra.mxu0 %v1147
        %1191 = vmatprep.subr.bf16.mxu0 0
        %1192 = vmatpush1.bf16.msra.mxu0 %v1148
        %1193 = vmatprep.subr.bf16.mxu0 0
        %1194 = vmatpush1.bf16.msra.mxu0 %v1149
        %1195 = vmatprep.subr.bf16.mxu0 0
        %1196 = vmatpush1.bf16.msra.mxu0 %v1150
        %1197 = vmatprep.subr.bf16.mxu0 0
        %1198 = vmatpush1.bf16.msra.mxu0 %v1151
        %1199 = vmatprep.subr.bf16.mxu0 0
        %1200 = vmatpush1.bf16.msra.mxu0 %v1152
        %1201 = vmatprep.mubr.bf16.mxu0 %v1130
        %1202 = vmatmul.mubr.bf16.gmra.mrb[0].mxu0 %v1129
        %v1203 = vpop.f32.mrb[0].mxu0
        %v1204 = vadd.f32 0.0, %v1203
        %v1205 = vpop.f32.mrb[0].mxu0
        %v1206 = vpop.f32.mrb[0].mxu0
        %v1207 = vadd.f32 0.0, %v1206
        %v1208 = vpop.f32.mrb[0].mxu0
        %1209 = vmatprep.mubr.bf16.mxu0 %v1134
        %1210 = vmatmul.mubr.bf16.gmra.mrb[0].mxu0 %v1133
        %v1211 = vpop.f32.mrb[0].mxu0
        %v1212 = vadd.f32 0.0, %v1211
        %v1213 = vpop.f32.mrb[0].mxu0
        %v1214 = vpop.f32.mrb[0].mxu0
        %v1215 = vadd.f32 0.0, %v1214
        %v1216 = vpop.f32.mrb[0].mxu0
        %1217 = vdwg.mxu0
        %1218 = vmatprep.subr.bf16.mxu0 0
        %1219 = vmatpush1.bf16.msra.mxu0 %v1153
        %1220 = vmatprep.subr.bf16.mxu0 0
        %1221 = vmatpush1.bf16.msra.mxu0 %v1154
        %1222 = vmatprep.subr.bf16.mxu0 0
        %1223 = vmatpush1.bf16.msra.mxu0 %v1155
        %1224 = vmatprep.subr.bf16.mxu0 0
        %1225 = vmatpush1.bf16.msra.mxu0 %v1156
        %1226 = vmatprep.subr.bf16.mxu0 0
        %1227 = vmatpush1.bf16.msra.mxu0 %v1157
        %1228 = vmatprep.subr.bf16.mxu0 0
        %1229 = vmatpush1.bf16.msra.mxu0 %v1158
        %1230 = vmatprep.subr.bf16.mxu0 0
        %1231 = vmatpush1.bf16.msra.mxu0 %v1159
        %1232 = vmatprep.subr.bf16.mxu0 0
        %1233 = vmatpush1.bf16.msra.mxu0 %v1160
        %1234 = vmatprep.subr.bf16.mxu0 0
        %1235 = vmatpush1.bf16.msra.mxu0 %v1161
        %1236 = vmatprep.subr.bf16.mxu0 0
        %1237 = vmatpush1.bf16.msra.mxu0 %v1162
        %1238 = vmatprep.subr.bf16.mxu0 0
        %1239 = vmatpush1.bf16.msra.mxu0 %v1163
        %1240 = vmatprep.subr.bf16.mxu0 0
        %1241 = vmatpush1.bf16.msra.mxu0 %v1164
        %1242 = vmatprep.subr.bf16.mxu0 0
        %1243 = vmatpush1.bf16.msra.mxu0 %v1165
        %1244 = vmatprep.subr.bf16.mxu0 0
        %1245 = vmatpush1.bf16.msra.mxu0 %v1166
        %1246 = vmatprep.subr.bf16.mxu0 0
        %1247 = vmatpush1.bf16.msra.mxu0 %v1167
        %1248 = vmatprep.subr.bf16.mxu0 0
        %1249 = vmatpush1.bf16.msra.mxu0 %v1168
        %1250 = vmatprep.mubr.bf16.mxu0 %v1132
        %1251 = vmatmul.mubr.bf16.gmra.mrb[0].mxu0 %v1131
        %v1252 = vpop.f32.mrb[0].mxu0
        %v1253 = vadd.f32 %v1204, %v1252
        %v1254 = vpop.f32.mrb[0].mxu0
        %v1255 = vpop.f32.mrb[0].mxu0
        %v1256 = vadd.f32 %v1207, %v1255
        %v1257 = vpop.f32.mrb[0].mxu0
        %1258 = vmatprep.mubr.bf16.mxu0 %v1136
        %1259 = vmatmul.mubr.bf16.gmra.mrb[0].mxu0 %v1135
        %v1260 = vpop.f32.mrb[0].mxu0
        %v1261 = vadd.f32 %v1212, %v1260
        %v1262 = vpop.f32.mrb[0].mxu0
        %v1263 = vpop.f32.mrb[0].mxu0
        %v1264 = vadd.f32 %v1215, %v1263
        %v1265 = vpop.f32.mrb[0].mxu0
        %1266 = vdwg.mxu0
        %1267 = vst [vmem:[%s300] sm:$0xff] %v1253
        %1268 = vst [vmem:[%s300 + $0x8] sm:$0xff] %v1256
        %1269 = vst [vmem:[%s300 + $0x10] sm:$0xff] %v1261
        %1270 = vst [vmem:[%s300 + $0x18] sm:$0xff] %v1264
        %s1271 = sadd.s32 %s320, 16
        %s1272 = sld [smem:[#allocation2 + %s1271]]
        %v1273 = vstv %s1272
        %v1274 = vmul.f32 %v1273, %v317
        %s1275 = sadd.s32 %s320, 17
        %s1276 = sld [smem:[#allocation2 + %s1275]]
        %v1277 = vstv %s1276
        %v1278 = vmul.f32 %v1277, %v317
        %v1280 = vrot.slane %v1278, 1
        %v1282 = vadd.f32 %v1274, %v1280
        %s1283 = sadd.s32 %s320, 18
        %s1284 = sld [smem:[#allocation2 + %s1283]]
        %v1285 = vstv %s1284
        %v1286 = vmul.f32 %v1285, %v319
        %v1288 = vrot.slane %v1286, 2
        %v1290 = vadd.f32 %v1282, %v1288
        %s1291 = sadd.s32 %s320, 19
        %s1292 = sld [smem:[#allocation2 + %s1291]]
        %v1293 = vstv %s1292
        %v1294 = vadd.f32 %v1290, %v1293
        %s1295 = sadd.s32 %s320, 20
        %s1296 = sld [smem:[#allocation2 + %s1295]]
        %v1297 = vstv %s1296
        %v1298 = vmul.f32 %v1297, %v317
        %s1299 = sadd.s32 %s320, 21
        %s1300 = sld [smem:[#allocation2 + %s1299]]
        %v1301 = vstv %s1300
        %v1302 = vmul.f32 %v1301, %v317
        %v1304 = vrot.slane %v1302, 1
        %v1306 = vadd.f32 %v1298, %v1304
        %s1307 = sadd.s32 %s320, 22
        %s1308 = sld [smem:[#allocation2 + %s1307]]
        %v1309 = vstv %s1308
        %v1310 = vmul.f32 %v1309, %v319
        %v1312 = vrot.slane %v1310, 2
        %v1314 = vadd.f32 %v1306, %v1312
        %s1315 = sadd.s32 %s320, 23
        %s1316 = sld [smem:[#allocation2 + %s1315]]
        %v1317 = vstv %s1316
        %v1318 = vadd.f32 %v1314, %v1317
        %s1319 = sadd.s32 %s320, 24
        %s1320 = sld [smem:[#allocation2 + %s1319]]
        %v1321 = vstv %s1320
        %v1322 = vmul.f32 %v1321, %v317
        %s1323 = sadd.s32 %s320, 25
        %s1324 = sld [smem:[#allocation2 + %s1323]]
        %v1325 = vstv %s1324
        %v1326 = vmul.f32 %v1325, %v317
        %v1328 = vrot.slane %v1326, 1
        %v1330 = vadd.f32 %v1322, %v1328
        %s1331 = sadd.s32 %s320, 26
        %s1332 = sld [smem:[#allocation2 + %s1331]]
        %v1333 = vstv %s1332
        %v1334 = vmul.f32 %v1333, %v319
        %v1336 = vrot.slane %v1334, 2
        %v1338 = vadd.f32 %v1330, %v1336
        %s1339 = sadd.s32 %s320, 27
        %s1340 = sld [smem:[#allocation2 + %s1339]]
        %v1341 = vstv %s1340
        %v1342 = vadd.f32 %v1338, %v1341
        %v1343 = vmax.f32 %v1342, 0.05
        %vm1344 = vcmp.ge.f32.partialorder %v1294, 0.0
        %v1345 = vmul.f32 %v1343, 16.0
        %vm1346 = vcmp.lt.f32.partialorder %v1294, %v1345
        %vm1347 = vmand %vm1344, %vm1346
        %vm1348 = vcmp.ge.f32.partialorder %v1318, 0.0
        %vm1349 = vmand %vm1347, %vm1348
        %v1350 = vmul.f32 %v1343, 8.0
        %vm1351 = vcmp.lt.f32.partialorder %v1318, %v1350
        %vm1352 = vmand %vm1349, %vm1351
        %v1353 = vsel %vm1352, 1, 0
        %v1354 = vcvt.s32.f32 %v1353
        %v1355 = vrcp.pop %v1343
        %v1356 = vmul.f32 %v1343, %v1355
        %v1357 = vsub.f32 2.0, %v1356
        %v1358 = vmul.f32 %v1355, %v1357
        %v1359 = vmul.f32 %v1294, %v1358
        %v1360 = vmul.f32 %v1318, %v1358
        %v1361 = vfloor.f32 %v1359
        %v1362 = vfloor.f32 %v1360
        %v1363 = vsub.f32 %v1359, %v1361
        %v1364 = vsub.f32 %v1360, %v1362
        %v1365 = vcvt.f32.s32.to.zero.pseudo %v1361
        %v1366 = vcvt.f32.s32.to.zero.pseudo %v1362
        %vm1367 = vcmp.ge.s32.totalorder %v1365, 0
        %vm1368 = vcmp.lt.s32.totalorder %v1365, 16
        %vm1369 = vmand %vm1367, %vm1368
        %v1370 = vsel %vm1369, 1, 0
        %v1371 = vcvt.s32.f32 %v1370
        %vm1372 = vcmp.ge.s32.totalorder %v1365, 4294967295
        %vm1373 = vcmp.lt.s32.totalorder %v1365, 15
        %vm1374 = vmand %vm1372, %vm1373
        %v1375 = vsel %vm1374, 1, 0
        %v1376 = vcvt.s32.f32 %v1375
        %vm1377 = vcmp.ge.s32.totalorder %v1366, 0
        %vm1378 = vcmp.lt.s32.totalorder %v1366, 8
        %vm1379 = vmand %vm1377, %vm1378
        %v1380 = vsel %vm1379, 1, 0
        %v1381 = vcvt.s32.f32 %v1380
        %vm1382 = vcmp.ge.s32.totalorder %v1366, 4294967295
        %vm1383 = vcmp.lt.s32.totalorder %v1366, 7
        %vm1384 = vmand %vm1382, %vm1383
        %v1385 = vsel %vm1384, 1, 0
        %v1386 = vcvt.s32.f32 %v1385
        %v1387 = vsub.f32 1.0, %v1363
        %v1388 = vsub.f32 1.0, %v1364
        %v1389 = vmul.f32 %v1387, %v1388
        %v1390 = vmul.f32 %v1371, %v1381
        %v1391 = vmul.f32 %v1389, %v1390
        %v1392 = vmul.f32 %v1363, %v1388
        %v1393 = vmul.f32 %v1376, %v1381
        %v1394 = vmul.f32 %v1392, %v1393
        %v1395 = vmul.f32 %v1387, %v1364
        %v1396 = vmul.f32 %v1371, %v1386
        %v1397 = vmul.f32 %v1395, %v1396
        %v1398 = vmul.f32 %v1363, %v1364
        %v1399 = vmul.f32 %v1376, %v1386
        %v1400 = vmul.f32 %v1398, %v1399
        %v1401 = vmul.u32 %v1366, 16
        %v1402 = vadd.s32 %v1401, %v1365
        %v1403 = vlaneseq
        %v1404 = vshrl.u32 %v1403, 7
        %v1405 = vsub.s32 0, %v1404
        %v1406 = vrot.slane %v1402, %v1405
        %v1407 = vsub.s32 %v451, %v1406
        %v1408 = vsub.s32 %v452, %v1406
        %v1409 = vsub.s32 %v453, %v1406
        %v1410 = vsub.s32 %v454, %v1406
        %v1411 = vsub.s32 %v455, %v1406
        %v1412 = vsub.s32 %v456, %v1406
        %v1413 = vsub.s32 %v457, %v1406
        %v1414 = vsub.s32 %v458, %v1406
        %v1415 = vsub.s32 %v459, %v1406
        %v1416 = vsub.s32 %v460, %v1406
        %v1417 = vsub.s32 %v461, %v1406
        %v1418 = vsub.s32 %v462, %v1406
        %v1419 = vsub.s32 %v463, %v1406
        %v1420 = vsub.s32 %v464, %v1406
        %v1421 = vsub.s32 %v465, %v1406
        %v1422 = vsub.s32 %v466, %v1406
        %vm1423 = vcmp.eq.s32.totalorder %v1407, 0
        %vm1424 = vcmp.eq.s32.totalorder %v1408, 0
        %vm1425 = vcmp.eq.s32.totalorder %v1409, 0
        %vm1426 = vcmp.eq.s32.totalorder %v1410, 0
        %vm1427 = vcmp.eq.s32.totalorder %v1411, 0
        %vm1428 = vcmp.eq.s32.totalorder %v1412, 0
        %vm1429 = vcmp.eq.s32.totalorder %v1413, 0
        %vm1430 = vcmp.eq.s32.totalorder %v1414, 0
        %vm1431 = vcmp.eq.s32.totalorder %v1415, 0
        %vm1432 = vcmp.eq.s32.totalorder %v1416, 0
        %vm1433 = vcmp.eq.s32.totalorder %v1417, 0
        %vm1434 = vcmp.eq.s32.totalorder %v1418, 0
        %vm1435 = vcmp.eq.s32.totalorder %v1419, 0
        %vm1436 = vcmp.eq.s32.totalorder %v1420, 0
        %vm1437 = vcmp.eq.s32.totalorder %v1421, 0
        %vm1438 = vcmp.eq.s32.totalorder %v1422, 0
        %vm1439 = vcmp.eq.s32.totalorder %v1407, 1
        %vm1440 = vcmp.eq.s32.totalorder %v1408, 1
        %vm1441 = vcmp.eq.s32.totalorder %v1409, 1
        %vm1442 = vcmp.eq.s32.totalorder %v1410, 1
        %vm1443 = vcmp.eq.s32.totalorder %v1411, 1
        %vm1444 = vcmp.eq.s32.totalorder %v1412, 1
        %vm1445 = vcmp.eq.s32.totalorder %v1413, 1
        %vm1446 = vcmp.eq.s32.totalorder %v1414, 1
        %vm1447 = vcmp.eq.s32.totalorder %v1415, 1
        %vm1448 = vcmp.eq.s32.totalorder %v1416, 1
        %vm1449 = vcmp.eq.s32.totalorder %v1417, 1
        %vm1450 = vcmp.eq.s32.totalorder %v1418, 1
        %vm1451 = vcmp.eq.s32.totalorder %v1419, 1
        %vm1452 = vcmp.eq.s32.totalorder %v1420, 1
        %vm1453 = vcmp.eq.s32.totalorder %v1421, 1
        %vm1454 = vcmp.eq.s32.totalorder %v1422, 1
        %vm1455 = vcmp.eq.s32.totalorder %v1407, 16
        %vm1456 = vcmp.eq.s32.totalorder %v1408, 16
        %vm1457 = vcmp.eq.s32.totalorder %v1409, 16
        %vm1458 = vcmp.eq.s32.totalorder %v1410, 16
        %vm1459 = vcmp.eq.s32.totalorder %v1411, 16
        %vm1460 = vcmp.eq.s32.totalorder %v1412, 16
        %vm1461 = vcmp.eq.s32.totalorder %v1413, 16
        %vm1462 = vcmp.eq.s32.totalorder %v1414, 16
        %vm1463 = vcmp.eq.s32.totalorder %v1415, 16
        %vm1464 = vcmp.eq.s32.totalorder %v1416, 16
        %vm1465 = vcmp.eq.s32.totalorder %v1417, 16
        %vm1466 = vcmp.eq.s32.totalorder %v1418, 16
        %vm1467 = vcmp.eq.s32.totalorder %v1419, 16
        %vm1468 = vcmp.eq.s32.totalorder %v1420, 16
        %vm1469 = vcmp.eq.s32.totalorder %v1421, 16
        %vm1470 = vcmp.eq.s32.totalorder %v1422, 16
        %vm1471 = vcmp.eq.s32.totalorder %v1407, 17
        %vm1472 = vcmp.eq.s32.totalorder %v1408, 17
        %vm1473 = vcmp.eq.s32.totalorder %v1409, 17
        %vm1474 = vcmp.eq.s32.totalorder %v1410, 17
        %vm1475 = vcmp.eq.s32.totalorder %v1411, 17
        %vm1476 = vcmp.eq.s32.totalorder %v1412, 17
        %vm1477 = vcmp.eq.s32.totalorder %v1413, 17
        %vm1478 = vcmp.eq.s32.totalorder %v1414, 17
        %vm1479 = vcmp.eq.s32.totalorder %v1415, 17
        %vm1480 = vcmp.eq.s32.totalorder %v1416, 17
        %vm1481 = vcmp.eq.s32.totalorder %v1417, 17
        %vm1482 = vcmp.eq.s32.totalorder %v1418, 17
        %vm1483 = vcmp.eq.s32.totalorder %v1419, 17
        %vm1484 = vcmp.eq.s32.totalorder %v1420, 17
        %vm1485 = vcmp.eq.s32.totalorder %v1421, 17
        %vm1486 = vcmp.eq.s32.totalorder %v1422, 17
        %v1487 = vlaneseq
        %v1488 = vshrl.u32 %v1487, 7
        %v1489 = vsub.s32 0, %v1488
        %v1490 = vrot.slane %v1400, %v1489
        %v1491 = vsel %vm1471, %v1490, 0.0
        %v1492 = vsel %vm1472, %v1490, 0.0
        %v1493 = vsel %vm1473, %v1490, 0.0
        %v1494 = vsel %vm1474, %v1490, 0.0
        %v1495 = vsel %vm1475, %v1490, 0.0
        %v1496 = vsel %vm1476, %v1490, 0.0
        %v1497 = vsel %vm1477, %v1490, 0.0
        %v1498 = vsel %vm1478, %v1490, 0.0
        %v1499 = vsel %vm1479, %v1490, 0.0
        %v1500 = vsel %vm1480, %v1490, 0.0
        %v1501 = vsel %vm1481, %v1490, 0.0
        %v1502 = vsel %vm1482, %v1490, 0.0
        %v1503 = vsel %vm1483, %v1490, 0.0
        %v1504 = vsel %vm1484, %v1490, 0.0
        %v1505 = vsel %vm1485, %v1490, 0.0
        %v1506 = vsel %vm1486, %v1490, 0.0
        %v1507 = vlaneseq
        %v1508 = vshrl.u32 %v1507, 7
        %v1509 = vsub.s32 0, %v1508
        %v1510 = vrot.slane %v1397, %v1509
        %v1511 = vsel %vm1455, %v1510, %v1491
        %v1512 = vsel %vm1456, %v1510, %v1492
        %v1513 = vsel %vm1457, %v1510, %v1493
        %v1514 = vsel %vm1458, %v1510, %v1494
        %v1515 = vsel %vm1459, %v1510, %v1495
        %v1516 = vsel %vm1460, %v1510, %v1496
        %v1517 = vsel %vm1461, %v1510, %v1497
        %v1518 = vsel %vm1462, %v1510, %v1498
        %v1519 = vsel %vm1463, %v1510, %v1499
        %v1520 = vsel %vm1464, %v1510, %v1500
        %v1521 = vsel %vm1465, %v1510, %v1501
        %v1522 = vsel %vm1466, %v1510, %v1502
        %v1523 = vsel %vm1467, %v1510, %v1503
        %v1524 = vsel %vm1468, %v1510, %v1504
        %v1525 = vsel %vm1469, %v1510, %v1505
        %v1526 = vsel %vm1470, %v1510, %v1506
        %v1527 = vlaneseq
        %v1528 = vshrl.u32 %v1527, 7
        %v1529 = vsub.s32 0, %v1528
        %v1530 = vrot.slane %v1394, %v1529
        %v1531 = vsel %vm1439, %v1530, %v1511
        %v1532 = vsel %vm1440, %v1530, %v1512
        %v1533 = vsel %vm1441, %v1530, %v1513
        %v1534 = vsel %vm1442, %v1530, %v1514
        %v1535 = vsel %vm1443, %v1530, %v1515
        %v1536 = vsel %vm1444, %v1530, %v1516
        %v1537 = vsel %vm1445, %v1530, %v1517
        %v1538 = vsel %vm1446, %v1530, %v1518
        %v1539 = vsel %vm1447, %v1530, %v1519
        %v1540 = vsel %vm1448, %v1530, %v1520
        %v1541 = vsel %vm1449, %v1530, %v1521
        %v1542 = vsel %vm1450, %v1530, %v1522
        %v1543 = vsel %vm1451, %v1530, %v1523
        %v1544 = vsel %vm1452, %v1530, %v1524
        %v1545 = vsel %vm1453, %v1530, %v1525
        %v1546 = vsel %vm1454, %v1530, %v1526
        %v1547 = vlaneseq
        %v1548 = vshrl.u32 %v1547, 7
        %v1549 = vsub.s32 0, %v1548
        %v1550 = vrot.slane %v1391, %v1549
        %v1551 = vsel %vm1423, %v1550, %v1531
        %v1552 = vsel %vm1424, %v1550, %v1532
        %v1553 = vsel %vm1425, %v1550, %v1533
        %v1554 = vsel %vm1426, %v1550, %v1534
        %v1555 = vsel %vm1427, %v1550, %v1535
        %v1556 = vsel %vm1428, %v1550, %v1536
        %v1557 = vsel %vm1429, %v1550, %v1537
        %v1558 = vsel %vm1430, %v1550, %v1538
        %v1559 = vsel %vm1431, %v1550, %v1539
        %v1560 = vsel %vm1432, %v1550, %v1540
        %v1561 = vsel %vm1433, %v1550, %v1541
        %v1562 = vsel %vm1434, %v1550, %v1542
        %v1563 = vsel %vm1435, %v1550, %v1543
        %v1564 = vsel %vm1436, %v1550, %v1544
        %v1565 = vsel %vm1437, %v1550, %v1545
        %v1566 = vsel %vm1438, %v1550, %v1546
        %v1567 = vld [vmem:[%s270] sm:$0xff]
        %v1568 = vld [vmem:[%s270 + $0x8] sm:$0xff]
        %v1569 = vld [vmem:[%s270 + $0x10] sm:$0xff]
        %v1570 = vld [vmem:[%s270 + $0x18] sm:$0xff]
        %v1571 = vpack.c.bf16 %v1568, %v1567
        %v1572 = vpack.c.bf16 %v1570, %v1569
        %v1573 = vpack.c.bf16 %v1552, %v1551
        %v1574 = vpack.c.bf16 %v1554, %v1553
        %v1575 = vpack.c.bf16 %v1556, %v1555
        %v1576 = vpack.c.bf16 %v1558, %v1557
        %v1577 = vpack.c.bf16 %v1560, %v1559
        %v1578 = vpack.c.bf16 %v1562, %v1561
        %v1579 = vpack.c.bf16 %v1564, %v1563
        %v1580 = vpack.c.bf16 %v1566, %v1565
        %1581 = vmatprep.subr.bf16.mxu0 0
        %1582 = vmatpush1.bf16.msra.mxu0 %v1573
        %1583 = vmatprep.subr.bf16.mxu0 0
        %1584 = vmatpush1.bf16.msra.mxu0 %v1574
        %1585 = vmatprep.subr.bf16.mxu0 0
        %1586 = vmatpush1.bf16.msra.mxu0 %v1575
        %1587 = vmatprep.subr.bf16.mxu0 0
        %1588 = vmatpush1.bf16.msra.mxu0 %v1576
        %1589 = vmatprep.subr.bf16.mxu0 0
        %1590 = vmatpush1.bf16.msra.mxu0 %v1577
        %1591 = vmatprep.subr.bf16.mxu0 0
        %1592 = vmatpush1.bf16.msra.mxu0 %v1578
        %1593 = vmatprep.subr.bf16.mxu0 0
        %1594 = vmatpush1.bf16.msra.mxu0 %v1579
        %1595 = vmatprep.subr.bf16.mxu0 0
        %1596 = vmatpush1.bf16.msra.mxu0 %v1580
        %1597 = vmatprep.subr.bf16.mxu0 0
        %1598 = vmatpush1.bf16.msra.mxu0 0
        %1599 = vmatprep.subr.bf16.mxu0 0
        %1600 = vmatpush1.bf16.msra.mxu0 0
        %1601 = vmatprep.subr.bf16.mxu0 0
        %1602 = vmatpush1.bf16.msra.mxu0 0
        %1603 = vmatprep.subr.bf16.mxu0 0
        %1604 = vmatpush1.bf16.msra.mxu0 0
        %1605 = vmatprep.subr.bf16.mxu0 0
        %1606 = vmatpush1.bf16.msra.mxu0 0
        %1607 = vmatprep.subr.bf16.mxu0 0
        %1608 = vmatpush1.bf16.msra.mxu0 0
        %1609 = vmatprep.subr.bf16.mxu0 0
        %1610 = vmatpush1.bf16.msra.mxu0 0
        %1611 = vmatprep.subr.bf16.mxu0 0
        %1612 = vmatpush1.bf16.msra.mxu0 0
        %1613 = vmatprep.mubr.bf16.mxu0 0
        %1614 = vmatmul.mubr.bf16.gmra.mrb[0].mxu0 %v1571
        %v1615 = vpop.f32.mrb[0].mxu0
        %v1616 = vadd.f32 0.0, %v1615
        %v1617 = vpop.f32.mrb[0].mxu0
        %v1618 = vpop.f32.mrb[0].mxu0
        %v1619 = vadd.f32 0.0, %v1618
        %v1620 = vpop.f32.mrb[0].mxu0
        %1621 = vmatprep.mubr.bf16.mxu0 0
        %1622 = vmatmul.mubr.bf16.gmra.mrb[0].mxu0 %v1572
        %v1623 = vpop.f32.mrb[0].mxu0
        %v1624 = vadd.f32 0.0, %v1623
        %v1625 = vpop.f32.mrb[0].mxu0
        %v1626 = vpop.f32.mrb[0].mxu0
        %v1627 = vadd.f32 0.0, %v1626
        %v1628 = vpop.f32.mrb[0].mxu0
        %1629 = vdwg.mxu0
        %s1630 = scalar_lea.vmem %s300, 32 [#allocation9]
        %1631 = vst [vmem:[%s1630] sm:$0xff] %v1616
        %1632 = vst [vmem:[%s1630 + $0x8] sm:$0xff] %v1619
        %1633 = vst [vmem:[%s1630 + $0x10] sm:$0xff] %v1624
        %1634 = vst [vmem:[%s1630 + $0x18] sm:$0xff] %v1627
        %v1636 = vrot.slane %v1354, 7
        %vm1638 = vcmask 1040384
        %v1639 = vsel %vm1638, %v403, %v1636
        %1640 = vst [vmem:[%s307] sm:$0x3] %v1639
        %s1641 = sand.u32 %s132, 1
        %s1642 = scalar_lea.sflag [#allocation4], %s1641
        %s1643 = sand.u32 %s132, 1
        %s1644 = smul.addr %s1643, 64
        %s1645 = scalar_lea.vmem [#allocation9], %s1644
        %s1646 = sand.u32 %s158, 1
        %s1647 = scalar_lea.sflag [#allocation11], %s1646
        %s1648 = sand.u32 %s158, 1
        %s1649 = smul.addr %s1648, 2
        %s1650 = scalar_lea.vmem [#allocation10], %s1649
        // Predicated region
        $region49: #{tpu_custom_call.1} parent=35 // pred_check
          %p1651 = pneg %p142
        $region50: #{tpu_custom_call.1} parent=35 // pred_check_branch
          %1653 = sbr.rel (%p1651) target = $region52
        $region51: #{tpu_custom_call.1} parent=35 // pred_region
          %s1655 = ssub.s32 1024, 1024
          %1656 = vsyncadd %s1642, %s1655
          %s1657 = smul.addr %s30, 8
          %s1658 = smul.addr %s1657, 128
          %s1659 = scalar_lea.hbm %s4, %s1658
          %s1660 = sshll.u32 %s1645, 4
          %s1661 = int_to_ptr.vmem [resolvable:$true] %s1660
          %1666 = dma.vmem_to_hbm [thread:$0]  %s1661, 1024, %s1659, %s1642, 128, 128, 8
        $region52: #{tpu_custom_call.1} parent=35 // pred_fallthru
          _
        // Predicated region
        $region53: #{tpu_custom_call.1} parent=35 // pred_check
          %p1667 = pneg %p168
        $region54: #{tpu_custom_call.1} parent=35 // pred_check_branch
          %1669 = sbr.rel (%p1667) target = $region56
        $region55: #{tpu_custom_call.1} parent=35 // pred_region
          %s1671 = ssub.s32 32, 32
          %1672 = vsyncadd %s1647, %s1671
          %s1673 = smul.addr %s30, 32
          %s1674 = scalar_lea.hbm %s5, %s1673
          %s1676 = sshll.u32 %s1650, 4
          %s1677 = int_to_ptr.vmem [resolvable:$true] %s1676
          %1679 = dma.vmem_to_hbm [thread:$0]  %s1677, 32, %s1674, %s1647
        $region56: #{tpu_custom_call.1} parent=35 // pred_fallthru
          _
      $region36: #{tpu_custom_call.1} parent=5 // pred_fallthru
        _
      %p1680 = scmp.le.s32.totalorder 2, %s25
      // Predicated region
      $region57: #{tpu_custom_call.1} parent=5 // pred_check
        %p1681 = pneg %p1680
      $region58: #{tpu_custom_call.1} parent=5 // pred_check_branch
        %1683 = sbr.rel (%p1681) target = $region60
      $region59: #{tpu_custom_call.1} parent=5 // pred_region
        %s1684 = ssub.s32 %s25, 2
        // Predicated region
        $region61: #{tpu_custom_call.1} parent=59 // pred_check
          %p1685 = pneg %p148
        $region62: #{tpu_custom_call.1} parent=59 // pred_check_branch
          %1687 = sbr.rel (%p1685) target = $region64
        $region63: #{tpu_custom_call.1} parent=59 // pred_region
          %s1688 = sand.u32 %s133, 1
          %s1689 = scalar_lea.sflag [#allocation4], %s1688
          %s1690 = sand.u32 %s133, 1
          %s1691 = smul.addr %s1690, 64
          %s1692 = scalar_lea.vmem [#allocation9], %s1691
          %1693 = dma.done %s1689, 1024
        $region64: #{tpu_custom_call.1} parent=59 // pred_fallthru
          _
        // Predicated region
        $region65: #{tpu_custom_call.1} parent=59 // pred_check
          %p1694 = pneg %p174
        $region66: #{tpu_custom_call.1} parent=59 // pred_check_branch
          %1696 = sbr.rel (%p1694) target = $region68
        $region67: #{tpu_custom_call.1} parent=59 // pred_region
          %s1697 = sand.u32 %s159, 1
          %s1698 = scalar_lea.sflag [#allocation11], %s1697
          %s1699 = sand.u32 %s159, 1
          %s1700 = smul.addr %s1699, 2
          %s1701 = scalar_lea.vmem [#allocation10], %s1700
          %1702 = dma.done %s1698, 32
        $region68: #{tpu_custom_call.1} parent=59 // pred_fallthru
          _
      $region60: #{tpu_custom_call.1} parent=5 // pred_fallthru
        _
    $region6: #{tpu_custom_call.1} parent=1 // loop_footer
      %s29 = sadd.s32 1, %s25
    $region7: #{tpu_custom_call.1} parent=1 // loop_footer_branch
      %24 = sbr.rel target = $region3
    $region8: #{tpu_custom_call.1} parent=1 // loop_exit
      _
    %1703 = vsyncpa [#allocation3], 1
    %s1704 = scalar_lea.sflag [#allocation3], 1
    %1705 = vsyncpa %s1704, 1
    %1706 = vsyncpa [#allocation8], 1
    %s1707 = scalar_lea.sflag [#allocation8], 1
    %1708 = vsyncpa %s1707, 1
    %1709 = vsyncpa [#allocation4], 1
    %s1710 = scalar_lea.sflag [#allocation4], 1
    %1711 = vsyncpa %s1710, 1
    %1712 = vsyncpa [#allocation11], 1
    %s1713 = scalar_lea.sflag [#allocation11], 1
    %1714 = vsyncpa %s1713, 1
    %1715 = vsyncpa [#allocation5], 1
    %s1716 = scalar_lea.sflag [#allocation5], 1
    %1717 = vsyncpa %s1716, 1

</llo_original>
